<compile_context>
chip_gen: v7x
topology: tpu7x:2x2x1
jax: 0.10.0
libtpu: 0.0.40
codegen_flags: <defaults>
</compile_context>

<pallas_src>
import math

import jax
import jax.numpy as jnp
import numpy as np
from jax.experimental import pallas as pl
from jax.experimental.pallas import tpu as pltpu

_ROW_PAD = 128  # pad the embedding-table row count to a lane-friendly multiple


def _gather_mu_logvar(idx_ref, tab_ref, dim):
    """Gather rows idx from the fused [mu | logvar] table via one-hot matmul.

    idx_ref : (TB, 1) int32 column of indices
    tab_ref : (N_pad, 2*dim) f32, resident in VMEM
    returns : mu (TB, dim), logvar (TB, dim)
    """
    tb = idx_ref.shape[0]
    n_pad = tab_ref.shape[0]
    ids = idx_ref[...]                                            # (TB, 1)
    iota = jax.lax.broadcasted_iota(jnp.int32, (tb, n_pad), 1)    # (TB, N_pad)
    onehot = (iota == ids).astype(jnp.float32)                    # (TB, N_pad)
    # One-hot selection on the MXU. HIGHEST precision keeps f32 rows exact
    # (one operand is exactly 0/1, so the multi-pass sum reconstructs b).
    gathered = jnp.dot(onehot, tab_ref[...],
                       preferred_element_type=jnp.float32,
                       precision=jax.lax.Precision.HIGHEST)       # (TB, 2*dim)
    return gathered[:, :dim], gathered[:, dim:]


def _vad_train_kernel(idx_ref, tab_ref, eps_ref,
                      mu_ref, lv_ref, std_ref, lat_ref, lat_aug_ref):
    """One grid step handles a (TB,) tile of batch elements.

    idx_ref     : (TB, 1)        int32
    tab_ref     : (N_pad, 2*dim) f32   fused [mu | logvar] table (resident)
    eps_ref     : (TB, P+1, dim) f32   rows [0..P-1] -> eps_aug, row [P] -> eps
    outputs     : mu/logvar/std/latent (TB, dim); latent_aug (TB, P, dim)
    """
    dim = mu_ref.shape[-1]
    p = lat_aug_ref.shape[1]

    mu, logvar = _gather_mu_logvar(idx_ref, tab_ref, dim)
    std = jnp.exp(0.5 * logvar)

    mu_ref[...] = mu
    lv_ref[...] = logvar
    std_ref[...] = std
    lat_ref[...] = mu + eps_ref[:, p, :] * std
    lat_aug_ref[...] = mu[:, None, :] + eps_ref[:, :p, :] * std[:, None, :]


def _vad_eval_kernel(idx_ref, tab_ref, mu_ref, lv_ref, std_ref):
    """Eval / test mode: gather + exp only."""
    dim = mu_ref.shape[-1]
    mu, logvar = _gather_mu_logvar(idx_ref, tab_ref, dim)
    mu_ref[...] = mu
    lv_ref[...] = logvar
    std_ref[...] = jnp.exp(0.5 * logvar)


def _choose_tile(batch):
    """Biggest tile that still leaves >=2 grid steps (v7x: feed both TCs)."""
    tb = 256
    while tb > 8 and pl.cdiv(batch, tb) < 2:
        tb //= 2
    return tb


class VADLogVarPallas:
    """JAX/Pallas port of deep_sdf.dualsdf_model.VADLogVar."""

    def __init__(self, N, dim, key):
        self.N = N
        self.dim = dim
        k_mu, k_lv = jax.random.split(key)
        init_std = 1.0 / math.sqrt(dim)
        self.weight_mu = (jax.random.normal(k_mu, (N, dim)) * init_std).astype(jnp.float32)
        self.weight_logvar = (jax.random.normal(k_lv, (N, dim)) * init_std).astype(jnp.float32)

        # Fused [mu | logvar] table, row-padded so the one-hot matmul K dim is
        # lane/sublane friendly. Padded rows are never selected (idx < N).
        self._n_pad = pl.cdiv(N, _ROW_PAD) * _ROW_PAD
        fused = jnp.concatenate([self.weight_mu, self.weight_logvar], axis=1)   # (N, 2*dim)
        self._tab_fused = jnp.pad(fused, ((0, self._n_pad - N), (0, 0)))
        print('[VADLogVar Embedding] #entries: {}; #dims: {}'.format(N, dim))

    # ----- VMEM budget handling -------------------------------------------
    def _vmem_estimate(self, tb, p):
        f = 4
        tab = self._n_pad * 2 * self.dim * f
        per_step = (tb * (p + 1) * self.dim            # eps_all block
                    + tb                               # idx block
                    + 4 * tb * self.dim                # mu/logvar/std/latent blocks
                    + tb * p * self.dim) * f           # latent_aug block
        inter = (tb * self._n_pad + 3 * tb * 2 * self.dim) * f   # onehot + temporaries
        return 2 * (tab + per_step) + inter            # x2: double buffering

    def _compiler_params(self, tb, p):
        est = self._vmem_estimate(tb, p)
        if est > (48 << 20):
            # TODO(synk): manual make_async_copy row-gather path for huge tables.
            raise NotImplementedError(
                "embedding table too large for the resident-VMEM path "
                f"(~{est >> 20} MiB needed)")
        kwargs = dict(dimension_semantics=("parallel",))
        if est > (24 << 20):
            kwargs["vmem_limit_bytes"] = int(min(est + (8 << 20), 56 << 20))
        return pltpu.CompilerParams(**kwargs)

    # ----- forward ----------------------------------------------------------
    def forward(self, idx, num_augment_pts=None, key=None, training=True):
        B = int(idx.shape[0])
        dim = self.dim
        tb = _choose_tile(B)
        b_pad = pl.cdiv(B, tb) * tb
        grid = (b_pad // tb,)

        # NOTE: torch nn.Embedding would raise on out-of-range indices; here we
        # clamp (silent) since device-side raising is not available.
        idx32 = jnp.clip(idx.astype(jnp.int32), 0, self.N - 1).reshape(B, 1)
        idx_col = jnp.pad(idx32, ((0, b_pad - B), (0, 0)))

        idx_spec = pl.BlockSpec((tb, 1), lambda g: (g, 0))
        tab_spec = pl.BlockSpec((self._n_pad, 2 * dim), lambda g: (0, 0))  # resident
        vec_spec = pl.BlockSpec((tb, dim), lambda g: (g, 0))

        if not training:
            print('[VADLogVar Embedding] Test mode forward')
            grid_spec = pltpu.PrefetchScalarGridSpec(
                num_scalar_prefetch=0, grid=grid,
                in_specs=[idx_spec, tab_spec],
                out_specs=[vec_spec, vec_spec, vec_spec],
            )
            mu, logvar, std = pl.pallas_call(
                _vad_eval_kernel,
                grid_spec=grid_spec,
                out_shape=tuple(jax.ShapeDtypeStruct((b_pad, dim), jnp.float32)
                                for _ in range(3)),
                compiler_params=self._compiler_params(tb, 0),
            )(idx_col, self._tab_fused)
            mu, logvar, std = mu[:B], logvar[:B], std[:B]
            return {'latent_code': mu, 'mu': mu, 'logvar': logvar, 'std': std}

        P = int(num_augment_pts)
        if key is None:
            raise ValueError("training forward requires a fresh jax PRNG key per step")
        # Single fused noise stream: rows [0..P-1] -> eps_aug, row [P] -> eps.
        # Drawn for the unpadded batch so it is reproducible independent of TB.
        eps_all = jax.random.normal(key, (B, P + 1, dim), dtype=jnp.float32)
        eps_all = jnp.pad(eps_all, ((0, b_pad - B), (0, 0), (0, 0)))

        grid_spec = pltpu.PrefetchScalarGridSpec(
            num_scalar_prefetch=0, grid=grid,
            in_specs=[
                idx_spec,
                tab_spec,
                pl.BlockSpec((tb, P + 1, dim), lambda g: (g, 0, 0)),
            ],
            out_specs=[
                vec_spec, vec_spec, vec_spec, vec_spec,
                pl.BlockSpec((tb, P, dim), lambda g: (g, 0, 0)),
            ],
        )
        out_shape = (tuple(jax.ShapeDtypeStruct((b_pad, dim), jnp.float32)
                           for _ in range(4))
                     + (jax.ShapeDtypeStruct((b_pad, P, dim), jnp.float32),))
        mu, logvar, std, latent, latent_aug = pl.pallas_call(
            _vad_train_kernel,
            grid_spec=grid_spec,
            out_shape=out_shape,
            compiler_params=self._compiler_params(tb, P),
        )(idx_col, self._tab_fused, eps_all)

        return {'latent_code': latent[:B],
                'latent_code_augment': latent_aug[:B],
                'mu': mu[:B], 'logvar': logvar[:B], 'std': std[:B]}


if __name__ == "__main__":
    key = jax.random.PRNGKey(0)
    k_param, k_idx, k_eps = jax.random.split(key, 3)

    N, dim = 64, 128        # embedding entries / latent dim
    B, P = 20, 8            # batch of indices / num_augment_pts

    module = VADLogVarPallas(N, dim, k_param)
    idx = jax.random.randint(k_idx, (B,), 0, N, dtype=jnp.int32)

    out = module.forward(idx, num_augment_pts=P, key=k_eps, training=True)
    jax.block_until_ready(out)

    # Pure-JAX reference (same eps convention as the kernel wrapper).
    mu_ref = module.weight_mu[idx]
    lv_ref = module.weight_logvar[idx]
    std_ref = jnp.exp(0.5 * lv_ref)
    eps_all_ref = jax.random.normal(k_eps, (B, P + 1, dim), dtype=jnp.float32)
    eps_ref = eps_all_ref[:, P, :]
    eps_aug_ref = eps_all_ref[:, :P, :]
    lat_ref = mu_ref + eps_ref * std_ref
    lat_aug_ref = mu_ref[:, None, :] + eps_aug_ref * std_ref[:, None, :]

    np.testing.assert_allclose(np.asarray(out['mu']), np.asarray(mu_ref),
                               rtol=3e-5, atol=1e-6)
    np.testing.assert_allclose(np.asarray(out['logvar']), np.asarray(lv_ref),
                               rtol=3e-5, atol=1e-6)
    np.testing.assert_allclose(np.asarray(out['std']), np.asarray(std_ref),
                               rtol=3e-5, atol=1e-6)
    np.testing.assert_allclose(np.asarray(out['latent_code']), np.asarray(lat_ref),
                               rtol=5e-5, atol=1e-5)
    np.testing.assert_allclose(np.asarray(out['latent_code_augment']),
                               np.asarray(lat_aug_ref), rtol=5e-5, atol=1e-5)
    assert out['latent_code'].shape == (B, dim)
    assert out['latent_code_augment'].shape == (B, P, dim)
    assert out['mu'].shape == (B, dim)

    # Eval / test-mode path (gather + exp only; latent_code == mu).
    out_eval = module.forward(idx, training=False)
    jax.block_until_ready(out_eval)
    np.testing.assert_allclose(np.asarray(out_eval['latent_code']), np.asarray(mu_ref),
                               rtol=3e-5, atol=1e-6)
    np.testing.assert_allclose(np.asarray(out_eval['std']), np.asarray(std_ref),
                               rtol=3e-5, atol=1e-6)

    print("KERNEL_OK")
</pallas_src>

<mosaic_0001>
module attributes {stable_mosaic.version = 11 : i64} {
  func.func @_vad_train_kernel(%arg0: i32, %arg1: memref<16x1xi32, #tpu.memory_space<vmem>>, %arg2: memref<128x256xf32, #tpu.memory_space<vmem>>, %arg3: memref<16x9x128xf32, #tpu.memory_space<vmem>>, %arg4: memref<16x128xf32, #tpu.memory_space<vmem>>, %arg5: memref<16x128xf32, #tpu.memory_space<vmem>>, %arg6: memref<16x128xf32, #tpu.memory_space<vmem>>, %arg7: memref<16x128xf32, #tpu.memory_space<vmem>>, %arg8: memref<16x8x128xf32, #tpu.memory_space<vmem>>) attributes {dimension_semantics = [#tpu.dimension_semantics<parallel>], iteration_bounds = array<i64: 2>, scalar_prefetch = 0 : i64, scratch_operands = 0 : i64, tpu.core_type = #tpu.core_type<tc>, window_params = [{transform_indices = @transform_0, window_bounds = array<i64: 16, 1>}, {pipeline_mode = #tpu.pipeline_mode<synchronous>, transform_indices = @transform_1, window_bounds = array<i64: 128, 256>}, {transform_indices = @transform_2, window_bounds = array<i64: 16, 9, 128>}, {transform_indices = @transform_3, window_bounds = array<i64: 16, 128>}, {transform_indices = @transform_4, window_bounds = array<i64: 16, 128>}, {transform_indices = @transform_5, window_bounds = array<i64: 16, 128>}, {transform_indices = @transform_6, window_bounds = array<i64: 16, 128>}, {transform_indices = @transform_7, window_bounds = array<i64: 16, 8, 128>}]} {
    %c0 = arith.constant 0 : index
    %c0_0 = arith.constant 0 : index
    %0 = vector.load %arg1[%c0, %c0_0] : memref<16x1xi32, #tpu.memory_space<vmem>>, vector<16x1xi32>
    %1 = tpu.iota {dimensions = array<i32: 1>} : vector<16x128xi32>
    %2 = vector.broadcast %0 : vector<16x1xi32> to vector<16x128xi32>
    %3 = arith.cmpi eq, %1, %2 : vector<16x128xi32>
    %4 = arith.extui %3 : vector<16x128xi1> to vector<16x128xi32>
    %5 = arith.sitofp %4 : vector<16x128xi32> to vector<16x128xf32>
    %c0_1 = arith.constant 0 : index
    %c0_2 = arith.constant 0 : index
    %6 = vector.load %arg2[%c0_1, %c0_2] : memref<128x256xf32, #tpu.memory_space<vmem>>, vector<128x256xf32>
    %cst = arith.constant dense<0.000000e+00> : vector<16x256xf32>
    %7 = tpu.matmul %5, %6, %cst {dimension_numbers = #tpu.dot_dimension_numbers<[1], [0], [0], [1], [0, 0, 1, 1], [], []>, precision = #tpu.contract_precision<fp32>} : vector<16x128xf32>, vector<128x256xf32>, vector<16x256xf32> -> vector<16x256xf32>
    %8 = vector.extract_strided_slice %7 {offsets = [0, 0], sizes = [16, 128], strides = [1, 1]} : vector<16x256xf32> to vector<16x128xf32>
    %9 = vector.extract_strided_slice %7 {offsets = [0, 128], sizes = [16, 128], strides = [1, 1]} : vector<16x256xf32> to vector<16x128xf32>
    %cst_3 = arith.constant 5.000000e-01 : f32
    %10 = vector.broadcast %cst_3 : f32 to vector<16x128xf32>
    %11 = arith.mulf %10, %9 : vector<16x128xf32>
    %12 = math.exp %11 : vector<16x128xf32>
    %c0_4 = arith.constant 0 : index
    %c0_5 = arith.constant 0 : index
    %13 = vector.load %arg4[%c0_4, %c0_5] : memref<16x128xf32, #tpu.memory_space<vmem>>, vector<16x128xf32>
    tpu.vector_store %arg4[%c0_4, %c0_5], %8 {strides = array<i32>} : memref<16x128xf32, #tpu.memory_space<vmem>>, vector<16x128xf32>,
    %c0_6 = arith.constant 0 : index
    %c0_7 = arith.constant 0 : index
    %14 = vector.load %arg5[%c0_6, %c0_7] : memref<16x128xf32, #tpu.memory_space<vmem>>, vector<16x128xf32>
    tpu.vector_store %arg5[%c0_6, %c0_7], %9 {strides = array<i32>} : memref<16x128xf32, #tpu.memory_space<vmem>>, vector<16x128xf32>,
    %c0_8 = arith.constant 0 : index
    %c0_9 = arith.constant 0 : index
    %15 = vector.load %arg6[%c0_8, %c0_9] : memref<16x128xf32, #tpu.memory_space<vmem>>, vector<16x128xf32>
    tpu.vector_store %arg6[%c0_8, %c0_9], %12 {strides = array<i32>} : memref<16x128xf32, #tpu.memory_space<vmem>>, vector<16x128xf32>,
    %c0_10 = arith.constant 0 : index
    %c8 = arith.constant 8 : index
    %c0_11 = arith.constant 0 : index
    %16 = vector.load %arg3[%c0_10, %c8, %c0_11] : memref<16x9x128xf32, #tpu.memory_space<vmem>>, vector<16x1x128xf32>
    %17 = vector.shape_cast %16 : vector<16x1x128xf32> to vector<16x128xf32>
    %18 = arith.mulf %17, %12 : vector<16x128xf32>
    %19 = arith.addf %8, %18 : vector<16x128xf32>
    %c0_12 = arith.constant 0 : index
    %c0_13 = arith.constant 0 : index
    %20 = vector.load %arg7[%c0_12, %c0_13] : memref<16x128xf32, #tpu.memory_space<vmem>>, vector<16x128xf32>
    tpu.vector_store %arg7[%c0_12, %c0_13], %19 {strides = array<i32>} : memref<16x128xf32, #tpu.memory_space<vmem>>, vector<16x128xf32>,
    %21 = vector.shape_cast %8 : vector<16x128xf32> to vector<16x1x128xf32>
    %c0_14 = arith.constant 0 : index
    %c0_15 = arith.constant 0 : index
    %c0_16 = arith.constant 0 : index
    %22 = vector.load %arg3[%c0_14, %c0_15, %c0_16] : memref<16x9x128xf32, #tpu.memory_space<vmem>>, vector<16x8x128xf32>
    %23 = vector.shape_cast %12 : vector<16x128xf32> to vector<16x1x128xf32>
    %24 = vector.broadcast %23 : vector<16x1x128xf32> to vector<16x8x128xf32>
    %25 = arith.mulf %22, %24 : vector<16x8x128xf32>
    %26 = vector.broadcast %21 : vector<16x1x128xf32> to vector<16x8x128xf32>
    %27 = arith.addf %26, %25 : vector<16x8x128xf32>
    %c0_17 = arith.constant 0 : index
    %c0_18 = arith.constant 0 : index
    %c0_19 = arith.constant 0 : index
    %28 = vector.load %arg8[%c0_17, %c0_18, %c0_19] : memref<16x8x128xf32, #tpu.memory_space<vmem>>, vector<16x8x128xf32>
    tpu.vector_store %arg8[%c0_17, %c0_18, %c0_19], %27 {strides = array<i32>} : memref<16x8x128xf32, #tpu.memory_space<vmem>>, vector<16x8x128xf32>,
    return
  }
  func.func @transform_0(%arg0: i32) -> (i32, i32) {
    %c0_i32 = arith.constant 0 : i32
    %c0_i32_0 = arith.constant 0 : i32
    return %arg0, %c0_i32 : i32, i32
  }
  func.func @transform_1(%arg0: i32) -> (i32, i32) {
    %c0_i32 = arith.constant 0 : i32
    %c0_i32_0 = arith.constant 0 : i32
    %c0_i32_1 = arith.constant 0 : i32
    return %c0_i32, %c0_i32_0 : i32, i32
  }
  func.func @transform_2(%arg0: i32) -> (i32, i32, i32) {
    %c0_i32 = arith.constant 0 : i32
    %c0_i32_0 = arith.constant 0 : i32
    %c0_i32_1 = arith.constant 0 : i32
    return %arg0, %c0_i32, %c0_i32_0 : i32, i32, i32
  }
  func.func @transform_3(%arg0: i32) -> (i32, i32) {
    %c0_i32 = arith.constant 0 : i32
    %c0_i32_0 = arith.constant 0 : i32
    return %arg0, %c0_i32 : i32, i32
  }
  func.func @transform_4(%arg0: i32) -> (i32, i32) {
    %c0_i32 = arith.constant 0 : i32
    %c0_i32_0 = arith.constant 0 : i32
    return %arg0, %c0_i32 : i32, i32
  }
  func.func @transform_5(%arg0: i32) -> (i32, i32) {
    %c0_i32 = arith.constant 0 : i32
    %c0_i32_0 = arith.constant 0 : i32
    return %arg0, %c0_i32 : i32, i32
  }
  func.func @transform_6(%arg0: i32) -> (i32, i32) {
    %c0_i32 = arith.constant 0 : i32
    %c0_i32_0 = arith.constant 0 : i32
    return %arg0, %c0_i32 : i32, i32
  }
  func.func @transform_7(%arg0: i32) -> (i32, i32, i32) {
    %c0_i32 = arith.constant 0 : i32
    %c0_i32_0 = arith.constant 0 : i32
    %c0_i32_1 = arith.constant 0 : i32
    return %arg0, %c0_i32, %c0_i32_0 : i32, i32, i32
  }
}

</mosaic_0001>

<llo_original>
// kernel: tpu_custom_call.1
$region0: #{tpu_custom_call.1}
  #allocation0 [shape = 'u32[]', space=smem, size = 0x4, offset = 0x4, fixed_abs, tag = 'smem constant byte address 0x4 - core index']
  #allocation1 [shape = 'u32[144,128]{1,0:T(1,128)}', space=vmem, size = 0x12000, scoped, tag = 'internal scratch']
  %s0 = inlined_call_operand.vmem [shape: s32[32,1], index: 0, kind: input, shape index: {}]
  %s1 = inlined_call_operand.vmem [shape: f32[128,256], index: 1, kind: input, shape index: {}]
  %s2 = inlined_call_operand.vmem [shape: f32[32,9,128], index: 2, kind: input, shape index: {}]
  %s3 = inlined_call_operand.hbm [shape: f32[32,128], index: 3, kind: output, shape index: {0}]
  %s4 = inlined_call_operand.hbm [shape: f32[32,128], index: 4, kind: output, shape index: {1}]
  %s5 = inlined_call_operand.hbm [shape: f32[32,128], index: 5, kind: output, shape index: {2}]
  %s6 = inlined_call_operand.hbm [shape: f32[32,128], index: 6, kind: output, shape index: {3}]
  %s7 = inlined_call_operand.hbm [shape: f32[32,8,128], index: 7, kind: output, shape index: {4}]
  %8 = xla_tuple %s3, %s4, %s5, %s6, %s7
  %s9 = sld [smem:[#allocation0]]
  $region77: #{tpu_custom_call.1} parent=0
    _
  %s11 = ssub.s32 1, %s9
  %s12 = scalar_select 0, %s11, %s9
  $region1: #{tpu_custom_call.1} parent=0
    #allocation2 [shape = 'u8[16384]{0}', space=vmem, size = 0x4000, scoped, tag = 'output window, operand 0']
    #allocation3 [shape = 's32[2]{0}', space=sflag, size = 0x8, scoped, tag = 'scoped memory for tpu_custom_call.1']
    #allocation4 [shape = 'u8[16384]{0}', space=vmem, size = 0x4000, scoped, tag = 'output window, operand 1']
    #allocation5 [shape = 's32[2]{0}', space=sflag, size = 0x8, scoped, tag = 'scoped memory for tpu_custom_call.1']
    #allocation6 [shape = 'u8[16384]{0}', space=vmem, size = 0x4000, scoped, tag = 'output window, operand 2']
    #allocation7 [shape = 'u8[16384]{0}', space=vmem, size = 0x4000, scoped, tag = 'output window, operand 3']
    #allocation8 [shape = 's32[2]{0}', space=sflag, size = 0x8, scoped, tag = 'scoped memory for tpu_custom_call.1']
    #allocation9 [shape = 'u8[131072]{0}', space=vmem, size = 0x20000, scoped, tag = 'output window, operand 4']
    %13 = vsyncpa [#allocation3], 0
    %s14 = scalar_lea.sflag [#allocation3], 1
    %15 = vsyncpa %s14, 0
    %16 = vsyncpa [#allocation5], 0
    %s17 = scalar_lea.sflag [#allocation5], 1
    %18 = vsyncpa %s17, 0
    %19 = vsyncpa [#allocation8], 0
    %s20 = scalar_lea.sflag [#allocation8], 1
    %21 = vsyncpa %s20, 0
    loop: start=0, step=1, limit=4
    $region2: #{tpu_custom_call.1} parent=1 // loop_pre_header
      _
    $region3: #{tpu_custom_call.1} parent=1 // loop_header
      %s23 = sphi 0, %s27
      %p24 = scmp.ge.s32.totalorder %s23, 4
      %s33 = sphi 0, %s35
      %s36 = sphi 0, %s33
      %s37 = sphi 0, %s36
      %s53 = sphi 0, %s37
      %s57 = sphi 0, %s57
      %s59 = sphi 0, %s57
      %s60 = sphi 0, %s59
      %s74 = sphi 0, %s60
      %s80 = sphi 0, %s82
      %s83 = sphi 0, %s80
      %s84 = sphi 0, %s83
      %s100 = sphi 0, %s84
      %s106 = sphi 0, %s108
      %s109 = sphi 0, %s106
      %s110 = sphi 0, %s109
      %s126 = sphi 0, %s110
      %s132 = sphi 0, %s134
      %s135 = sphi 0, %s132
      %s136 = sphi 0, %s135
      %s152 = sphi 0, %s136
      %s158 = sphi 0, %s160
      %s161 = sphi 0, %s158
      %s162 = sphi 0, %s161
      %s178 = sphi 0, %s162
      %s184 = sphi 0, %s186
      %s187 = sphi 0, %s184
      %s188 = sphi 0, %s187
      %s204 = sphi 0, %s188
      %s210 = sphi 0, %s212
      %s213 = sphi 0, %s210
      %s214 = sphi 0, %s213
      %s230 = sphi 0, %s214
    $region4: #{tpu_custom_call.1} parent=1 // loop_header_branch
      %26 = sbr.rel (%p24) target = $region8
    $region5: #{tpu_custom_call.1} parent=1 // loop_body
      %s28 = ssub.s32 %s23, 1
      %s29 = ssub.s32 %s23, 2
      %s30 = sadd.s32 %s23, 1
      %s31 = ssub.s32 %s23, %s30
      %p32 = scmp.eq.s32.totalorder %s31, 0
      %s34 = sadd.s32 %s33, 1
      %s35 = scalar_select %p32, %s33, %s34
      %p38 = pneg %p32
      %p39 = scmp.eq.s32.totalorder %s23, 1
      %p40 = por %p38, %p39
      %p41 = scmp.ne.s32.totalorder %s33, %s36
      %p42 = scmp.eq.s32.totalorder %s23, 0
      %p43 = por %p41, %p42
      %p44 = scmp.ne.s32.totalorder %s33, %s36
      %p45 = scmp.eq.s32.totalorder %s28, 1
      %p46 = por %p44, %p45
      %p47 = scmp.ne.s32.totalorder %s36, %s37
      %p48 = scmp.eq.s32.totalorder %s28, 0
      %p49 = por %p47, %p48
      %p50 = scmp.ne.s32.totalorder %s36, %s37
      %p51 = scmp.eq.s32.totalorder %s29, 1
      %p52 = por %p50, %p51
      %p54 = scmp.ne.s32.totalorder %s37, %s53
      %p55 = scmp.eq.s32.totalorder %s29, 0
      %p56 = por %p54, %p55
      %s58 = sadd.s32 %s57, 1
      %p61 = scmp.eq.s32.totalorder %s23, 1
      %p62 = scmp.ne.s32.totalorder %s57, %s59
      %p63 = scmp.eq.s32.totalorder %s23, 0
      %p64 = por %p62, %p63
      %p65 = scmp.ne.s32.totalorder %s57, %s59
      %p66 = scmp.eq.s32.totalorder %s28, 1
      %p67 = por %p65, %p66
      %p68 = scmp.ne.s32.totalorder %s59, %s60
      %p69 = scmp.eq.s32.totalorder %s28, 0
      %p70 = por %p68, %p69
      %p71 = scmp.ne.s32.totalorder %s59, %s60
      %p72 = scmp.eq.s32.totalorder %s29, 1
      %p73 = por %p71, %p72
      %p75 = scmp.ne.s32.totalorder %s60, %s74
      %p76 = scmp.eq.s32.totalorder %s29, 0
      %p77 = por %p75, %p76
      %s78 = ssub.s32 %s23, %s30
      %p79 = scmp.eq.s32.totalorder %s78, 0
      %s81 = sadd.s32 %s80, 1
      %s82 = scalar_select %p79, %s80, %s81
      %p85 = pneg %p79
      %p86 = scmp.eq.s32.totalorder %s23, 1
      %p87 = por %p85, %p86
      %p88 = scmp.ne.s32.totalorder %s80, %s83
      %p89 = scmp.eq.s32.totalorder %s23, 0
      %p90 = por %p88, %p89
      %p91 = scmp.ne.s32.totalorder %s80, %s83
      %p92 = scmp.eq.s32.totalorder %s28, 1
      %p93 = por %p91, %p92
      %p94 = scmp.ne.s32.totalorder %s83, %s84
      %p95 = scmp.eq.s32.totalorder %s28, 0
      %p96 = por %p94, %p95
      %p97 = scmp.ne.s32.totalorder %s83, %s84
      %p98 = scmp.eq.s32.totalorder %s29, 1
      %p99 = por %p97, %p98
      %p101 = scmp.ne.s32.totalorder %s84, %s100
      %p102 = scmp.eq.s32.totalorder %s29, 0
      %p103 = por %p101, %p102
      %s104 = ssub.s32 %s23, %s30
      %p105 = scmp.eq.s32.totalorder %s104, 0
      %s107 = sadd.s32 %s106, 1
      %s108 = scalar_select %p105, %s106, %s107
      %p111 = pneg %p105
      %p112 = scmp.eq.s32.totalorder %s23, 1
      %p113 = por %p111, %p112
      %p114 = scmp.ne.s32.totalorder %s106, %s109
      %p115 = scmp.eq.s32.totalorder %s23, 0
      %p116 = por %p114, %p115
      %p117 = scmp.ne.s32.totalorder %s106, %s109
      %p118 = scmp.eq.s32.totalorder %s28, 1
      %p119 = por %p117, %p118
      %p120 = scmp.ne.s32.totalorder %s109, %s110
      %p121 = scmp.eq.s32.totalorder %s28, 0
      %p122 = por %p120, %p121
      %p123 = scmp.ne.s32.totalorder %s109, %s110
      %p124 = scmp.eq.s32.totalorder %s29, 1
      %p125 = por %p123, %p124
      %p127 = scmp.ne.s32.totalorder %s110, %s126
      %p128 = scmp.eq.s32.totalorder %s29, 0
      %p129 = por %p127, %p128
      %s130 = ssub.s32 %s23, %s30
      %p131 = scmp.eq.s32.totalorder %s130, 0
      %s133 = sadd.s32 %s132, 1
      %s134 = scalar_select %p131, %s132, %s133
      %p137 = pneg %p131
      %p138 = scmp.eq.s32.totalorder %s23, 1
      %p139 = por %p137, %p138
      %p140 = scmp.ne.s32.totalorder %s132, %s135
      %p141 = scmp.eq.s32.totalorder %s23, 0
      %p142 = por %p140, %p141
      %p143 = scmp.ne.s32.totalorder %s132, %s135
      %p144 = scmp.eq.s32.totalorder %s28, 1
      %p145 = por %p143, %p144
      %p146 = scmp.ne.s32.totalorder %s135, %s136
      %p147 = scmp.eq.s32.totalorder %s28, 0
      %p148 = por %p146, %p147
      %p149 = scmp.ne.s32.totalorder %s135, %s136
      %p150 = scmp.eq.s32.totalorder %s29, 1
      %p151 = por %p149, %p150
      %p153 = scmp.ne.s32.totalorder %s136, %s152
      %p154 = scmp.eq.s32.totalorder %s29, 0
      %p155 = por %p153, %p154
      %s156 = ssub.s32 %s23, %s30
      %p157 = scmp.eq.s32.totalorder %s156, 0
      %s159 = sadd.s32 %s158, 1
      %s160 = scalar_select %p157, %s158, %s159
      %p163 = pneg %p157
      %p164 = scmp.eq.s32.totalorder %s23, 1
      %p165 = por %p163, %p164
      %p166 = scmp.ne.s32.totalorder %s158, %s161
      %p167 = scmp.eq.s32.totalorder %s23, 0
      %p168 = por %p166, %p167
      %p169 = scmp.ne.s32.totalorder %s158, %s161
      %p170 = scmp.eq.s32.totalorder %s28, 1
      %p171 = por %p169, %p170
      %p172 = scmp.ne.s32.totalorder %s161, %s162
      %p173 = scmp.eq.s32.totalorder %s28, 0
      %p174 = por %p172, %p173
      %p175 = scmp.ne.s32.totalorder %s161, %s162
      %p176 = scmp.eq.s32.totalorder %s29, 1
      %p177 = por %p175, %p176
      %p179 = scmp.ne.s32.totalorder %s162, %s178
      %p180 = scmp.eq.s32.totalorder %s29, 0
      %p181 = por %p179, %p180
      %s182 = ssub.s32 %s23, %s30
      %p183 = scmp.eq.s32.totalorder %s182, 0
      %s185 = sadd.s32 %s184, 1
      %s186 = scalar_select %p183, %s184, %s185
      %p189 = pneg %p183
      %p190 = scmp.eq.s32.totalorder %s23, 1
      %p191 = por %p189, %p190
      %p192 = scmp.ne.s32.totalorder %s184, %s187
      %p193 = scmp.eq.s32.totalorder %s23, 0
      %p194 = por %p192, %p193
      %p195 = scmp.ne.s32.totalorder %s184, %s187
      %p196 = scmp.eq.s32.totalorder %s28, 1
      %p197 = por %p195, %p196
      %p198 = scmp.ne.s32.totalorder %s187, %s188
      %p199 = scmp.eq.s32.totalorder %s28, 0
      %p200 = por %p198, %p199
      %p201 = scmp.ne.s32.totalorder %s187, %s188
      %p202 = scmp.eq.s32.totalorder %s29, 1
      %p203 = por %p201, %p202
      %p205 = scmp.ne.s32.totalorder %s188, %s204
      %p206 = scmp.eq.s32.totalorder %s29, 0
      %p207 = por %p205, %p206
      %s208 = ssub.s32 %s23, %s30
      %p209 = scmp.eq.s32.totalorder %s208, 0
      %s211 = sadd.s32 %s210, 1
      %s212 = scalar_select %p209, %s210, %s211
      %p215 = pneg %p209
      %p216 = scmp.eq.s32.totalorder %s23, 1
      %p217 = por %p215, %p216
      %p218 = scmp.ne.s32.totalorder %s210, %s213
      %p219 = scmp.eq.s32.totalorder %s23, 0
      %p220 = por %p218, %p219
      %p221 = scmp.ne.s32.totalorder %s210, %s213
      %p222 = scmp.eq.s32.totalorder %s28, 1
      %p223 = por %p221, %p222
      %p224 = scmp.ne.s32.totalorder %s213, %s214
      %p225 = scmp.eq.s32.totalorder %s28, 0
      %p226 = por %p224, %p225
      %p227 = scmp.ne.s32.totalorder %s213, %s214
      %p228 = scmp.eq.s32.totalorder %s29, 1
      %p229 = por %p227, %p228
      %p231 = scmp.ne.s32.totalorder %s214, %s230
      %p232 = scmp.eq.s32.totalorder %s29, 0
      %p233 = por %p231, %p232
      %p234 = scmp.le.s32.totalorder 1, %s23
      %p235 = scmp.lt.s32.totalorder %s23, 3
      %p236 = pnand %p234, %p235
      %p237 = pneg %p236
      // Predicated region
      $region9: #{tpu_custom_call.1} parent=5 // pred_check
        _
      $region10: #{tpu_custom_call.1} parent=5 // pred_check_branch
        %239 = sbr.rel (%p236) target = $region12
      $region11: #{tpu_custom_call.1} parent=5 // pred_region
        %s240 = ssub.s32 %s23, 1
        // Predicated region
        $region13: #{tpu_custom_call.1} parent=11 // pred_check
          %p241 = pneg %p70
        $region14: #{tpu_custom_call.1} parent=11 // pred_check_branch
          %243 = sbr.rel (%p241) target = $region16
        $region15: #{tpu_custom_call.1} parent=11 // pred_region
          _
        $region16: #{tpu_custom_call.1} parent=11 // pred_fallthru
          _
      $region12: #{tpu_custom_call.1} parent=5 // pred_fallthru
        _
      %p244 = scmp.lt.s32.totalorder %s23, 2
      // Predicated region
      $region17: #{tpu_custom_call.1} parent=5 // pred_check
        %p245 = pneg %p244
      $region18: #{tpu_custom_call.1} parent=5 // pred_check_branch
        %247 = sbr.rel (%p245) target = $region20
      $region19: #{tpu_custom_call.1} parent=5 // pred_region
        // Predicated region
        $region21: #{tpu_custom_call.1} parent=19 // pred_check
          %p248 = pneg %p43
        $region22: #{tpu_custom_call.1} parent=19 // pred_check_branch
          %250 = sbr.rel (%p248) target = $region24
        $region23: #{tpu_custom_call.1} parent=19 // pred_region
          %s251 = smul.u32 2, %s23
          %p252 = scmp.lt.s32.totalorder %s251, 3
          %s253 = scalar_select %p252, %s251, 3
          %s254 = smul.addr %s253, 8
          %s255 = scalar_lea.vmem %s0, %s254
          %s256 = smul.u32 2, %s23
        $region24: #{tpu_custom_call.1} parent=19 // pred_fallthru
          _
        // Predicated region
        $region25: #{tpu_custom_call.1} parent=19 // pred_check
          %p257 = pneg %p90
        $region26: #{tpu_custom_call.1} parent=19 // pred_check_branch
          %259 = sbr.rel (%p257) target = $region28
        $region27: #{tpu_custom_call.1} parent=19 // pred_region
          %s260 = smul.u32 16, %s23
          %p261 = scmp.lt.s32.totalorder %s260, 31
          %s262 = scalar_select %p261, %s260, 31
          %s263 = smul.addr %s262, 2
          %s264 = smul.addr %s263, 8
          %s265 = scalar_lea.vmem %s2, %s264
          %s266 = smul.u32 16, %s23
        $region28: #{tpu_custom_call.1} parent=19 // pred_fallthru
          _
      $region20: #{tpu_custom_call.1} parent=5 // pred_fallthru
        _
      %p267 = scmp.le.s32.totalorder 1, %s23
      %p268 = scmp.lt.s32.totalorder %s23, 3
      %p269 = pnand %p267, %p268
      %p270 = pneg %p269
      // Predicated region
      $region29: #{tpu_custom_call.1} parent=5 // pred_check
        _
      $region30: #{tpu_custom_call.1} parent=5 // pred_check_branch
        %272 = sbr.rel (%p269) target = $region32
      $region31: #{tpu_custom_call.1} parent=5 // pred_region
        %s273 = ssub.s32 %s23, 1
        %s274 = smul.u32 2, %s28
        %p275 = scmp.lt.s32.totalorder %s274, 3
        %s276 = scalar_select %p275, %s274, 3
        %s277 = smul.addr %s276, 8
        %s278 = scalar_lea.vmem %s0, %s277
        %p279 = pneg %p49
        %p280 = pneg %p46
        %p281 = pneg %p70
        %p282 = pneg %p67
        %s283 = smul.u32 16, %s28
        %p284 = scmp.lt.s32.totalorder %s283, 31
        %s285 = scalar_select %p284, %s283, 31
        %s286 = smul.addr %s285, 2
        %s287 = smul.addr %s286, 8
        %s288 = scalar_lea.vmem %s2, %s287
        %p289 = pneg %p96
        %p290 = pneg %p93
        %p291 = pneg %p122
        %p292 = pneg %p119
        %s293 = sand.u32 %s109, 1
        %s294 = scalar_lea.sflag [#allocation3], %s293
        %s295 = sand.u32 %s109, 1
        %s296 = smul.addr %s295, 16
        %s297 = scalar_lea.vmem [#allocation2], %s296
        %p298 = pneg %p148
        %p299 = pneg %p145
        %s300 = sand.u32 %s28, 1
        %s301 = scalar_lea.sflag [#allocation5], %s300
        %s302 = sand.u32 %s135, 1
        %s303 = smul.addr %s302, 16
        %s304 = scalar_lea.vmem [#allocation4], %s303
        %p305 = pneg %p174
        %p306 = pneg %p171
        %s307 = sand.u32 %s28, 1
        %s308 = scalar_lea.sflag [#allocation5], %s307
        %s309 = sand.u32 %s161, 1
        %s310 = smul.addr %s309, 16
        %s311 = scalar_lea.vmem [#allocation6], %s310
        %p312 = pneg %p200
        %p313 = pneg %p197
        %s314 = sand.u32 %s28, 1
        %s315 = scalar_lea.sflag [#allocation8], %s314
        %s316 = sand.u32 %s187, 1
        %s317 = smul.addr %s316, 16
        %s318 = scalar_lea.vmem [#allocation7], %s317
        %p319 = pneg %p226
        %p320 = pneg %p223
        %s321 = sand.u32 %s28, 1
        %s322 = scalar_lea.sflag [#allocation8], %s321
        %s323 = sand.u32 %s213, 1
        %s324 = smul.addr %s323, 128
        %s325 = scalar_lea.vmem [#allocation9], %s324
        %s326 = smul.u32 2, %s28
        %p327 = scmp.lt.s32.totalorder %s326, 3
        %s328 = scalar_select %p327, %s326, 3
        %s329 = smul.addr %s328, 8
        %s330 = scalar_lea.vmem %s0, %s329
        %s331 = smul.u32 2, %s28
        %s332 = smul.u32 16, %s28
        %p333 = scmp.lt.s32.totalorder %s332, 31
        %s334 = scalar_select %p333, %s332, 31
        %s335 = smul.addr %s334, 2
        %s336 = smul.addr %s335, 8
        %s337 = scalar_lea.vmem %s2, %s336
        %s338 = smul.u32 16, %s28
        %s339 = smul.u32 2, %s28
        %s340 = smul.u32 2, %s28
        %s341 = smul.u32 2, %s28
        %s342 = smul.u32 2, %s28
        %s343 = smul.u32 16, %s28
        %v344 = vld [vmem:[%s330] sm:$0xff]
        %v345 = vld [vmem:[%s330 + $0x8] sm:$0xff]
        %v346 = vlaneseq
        %v347 = vand.u32 %v346, 127
        %348 = vset.pattern.permute.xlu0 0
        %349 = vperm.xlu0 %348, %v344
        %v350 = vpop.permute.xlu0 %349
        %351 = vset.pattern.permute.xlu0 0
        %352 = vperm.xlu0 %351, %v345
        %v353 = vpop.permute.xlu0 %352
        %vm354 = vcmp.eq.s32.totalorder %v347, %v350
        %vm355 = vcmp.eq.s32.totalorder %v347, %v353
        %v356 = vsel %vm354, 1, 0
        %v357 = vsel %vm355, 1, 0
        %v358 = vcvt.s32.f32 %v356
        %v359 = vcvt.s32.f32 %v357
        %v360 = vld [vmem:[%s1] sm:$0xff]
        %v361 = vld [vmem:[%s1 + $0x8] sm:$0xff]
        %v362 = vld [vmem:[%s1 + $0x10] sm:$0xff]
        %v363 = vld [vmem:[%s1 + $0x18] sm:$0xff]
        %v364 = vld [vmem:[%s1 + $0x20] sm:$0xff]
        %v365 = vld [vmem:[%s1 + $0x28] sm:$0xff]
        %v366 = vld [vmem:[%s1 + $0x30] sm:$0xff]
        %v367 = vld [vmem:[%s1 + $0x38] sm:$0xff]
        %v368 = vld [vmem:[%s1 + $0x40] sm:$0xff]
        %v369 = vld [vmem:[%s1 + $0x48] sm:$0xff]
        %v370 = vld [vmem:[%s1 + $0x50] sm:$0xff]
        %v371 = vld [vmem:[%s1 + $0x58] sm:$0xff]
        %v372 = vld [vmem:[%s1 + $0x60] sm:$0xff]
        %v373 = vld [vmem:[%s1 + $0x68] sm:$0xff]
        %v374 = vld [vmem:[%s1 + $0x70] sm:$0xff]
        %v375 = vld [vmem:[%s1 + $0x78] sm:$0xff]
        %v376 = vld [vmem:[%s1 + $0x80] sm:$0xff]
        %v377 = vld [vmem:[%s1 + $0x88] sm:$0xff]
        %v378 = vld [vmem:[%s1 + $0x90] sm:$0xff]
        %v379 = vld [vmem:[%s1 + $0x98] sm:$0xff]
        %v380 = vld [vmem:[%s1 + $0xa0] sm:$0xff]
        %v381 = vld [vmem:[%s1 + $0xa8] sm:$0xff]
        %v382 = vld [vmem:[%s1 + $0xb0] sm:$0xff]
        %v383 = vld [vmem:[%s1 + $0xb8] sm:$0xff]
        %v384 = vld [vmem:[%s1 + $0xc0] sm:$0xff]
        %v385 = vld [vmem:[%s1 + $0xc8] sm:$0xff]
        %v386 = vld [vmem:[%s1 + $0xd0] sm:$0xff]
        %v387 = vld [vmem:[%s1 + $0xd8] sm:$0xff]
        %v388 = vld [vmem:[%s1 + $0xe0] sm:$0xff]
        %v389 = vld [vmem:[%s1 + $0xe8] sm:$0xff]
        %v390 = vld [vmem:[%s1 + $0xf0] sm:$0xff]
        %v391 = vld [vmem:[%s1 + $0xf8] sm:$0xff]
        %v392 = vand.u32 %v361, 4294901760
        %393 = vmatprep.subr.mxu0 %v392
        %v394 = vand.u32 %v360, 4294901760
        %395 = vmatpush1.msra.mxu0 %v394
        %v396 = vand.u32 %v363, 4294901760
        %397 = vmatprep.subr.mxu0 %v396
        %v398 = vand.u32 %v362, 4294901760
        %399 = vmatpush1.msra.mxu0 %v398
        %v400 = vand.u32 %v365, 4294901760
        %401 = vmatprep.subr.mxu0 %v400
        %v402 = vand.u32 %v364, 4294901760
        %403 = vmatpush1.msra.mxu0 %v402
        %v404 = vand.u32 %v367, 4294901760
        %405 = vmatprep.subr.mxu0 %v404
        %v406 = vand.u32 %v366, 4294901760
        %407 = vmatpush1.msra.mxu0 %v406
        %v408 = vand.u32 %v369, 4294901760
        %409 = vmatprep.subr.mxu0 %v408
        %v410 = vand.u32 %v368, 4294901760
        %411 = vmatpush1.msra.mxu0 %v410
        %v412 = vand.u32 %v371, 4294901760
        %413 = vmatprep.subr.mxu0 %v412
        %v414 = vand.u32 %v370, 4294901760
        %415 = vmatpush1.msra.mxu0 %v414
        %v416 = vand.u32 %v373, 4294901760
        %417 = vmatprep.subr.mxu0 %v416
        %v418 = vand.u32 %v372, 4294901760
        %419 = vmatpush1.msra.mxu0 %v418
        %v420 = vand.u32 %v375, 4294901760
        %421 = vmatprep.subr.mxu0 %v420
        %v422 = vand.u32 %v374, 4294901760
        %423 = vmatpush1.msra.mxu0 %v422
        %v424 = vand.u32 %v377, 4294901760
        %425 = vmatprep.subr.mxu0 %v424
        %v426 = vand.u32 %v376, 4294901760
        %427 = vmatpush1.msra.mxu0 %v426
        %v428 = vand.u32 %v379, 4294901760
        %429 = vmatprep.subr.mxu0 %v428
        %v430 = vand.u32 %v378, 4294901760
        %431 = vmatpush1.msra.mxu0 %v430
        %v432 = vand.u32 %v381, 4294901760
        %433 = vmatprep.subr.mxu0 %v432
        %v434 = vand.u32 %v380, 4294901760
        %435 = vmatpush1.msra.mxu0 %v434
        %v436 = vand.u32 %v383, 4294901760
        %437 = vmatprep.subr.mxu0 %v436
        %v438 = vand.u32 %v382, 4294901760
        %439 = vmatpush1.msra.mxu0 %v438
        %v440 = vand.u32 %v385, 4294901760
        %441 = vmatprep.subr.mxu0 %v440
        %v442 = vand.u32 %v384, 4294901760
        %443 = vmatpush1.msra.mxu0 %v442
        %v444 = vand.u32 %v387, 4294901760
        %445 = vmatprep.subr.mxu0 %v444
        %v446 = vand.u32 %v386, 4294901760
        %447 = vmatpush1.msra.mxu0 %v446
        %v448 = vand.u32 %v389, 4294901760
        %449 = vmatprep.subr.mxu0 %v448
        %v450 = vand.u32 %v388, 4294901760
        %451 = vmatpush1.msra.mxu0 %v450
        %v452 = vand.u32 %v391, 4294901760
        %453 = vmatprep.subr.mxu0 %v452
        %v454 = vand.u32 %v390, 4294901760
        %455 = vmatpush1.msra.mxu0 %v454
        %456 = vmatprep.subr.mxu0 0.0
        %457 = vmatpush1.msra.mxu0 0.0
        %458 = vmatprep.subr.mxu0 0.0
        %459 = vmatpush1.msra.mxu0 0.0
        %460 = vmatprep.subr.mxu0 0.0
        %461 = vmatpush1.msra.mxu0 0.0
        %462 = vmatprep.subr.mxu0 0.0
        %463 = vmatpush1.msra.mxu0 0.0
        %464 = vmatprep.subr.mxu0 0.0
        %465 = vmatpush1.msra.mxu0 0.0
        %466 = vmatprep.subr.mxu0 0.0
        %467 = vmatpush1.msra.mxu0 0.0
        %468 = vmatprep.subr.mxu0 0.0
        %469 = vmatpush1.msra.mxu0 0.0
        %470 = vmatprep.subr.mxu0 0.0
        %471 = vmatpush1.msra.mxu0 0.0
        %472 = vmatprep.subr.mxu0 0.0
        %473 = vmatpush1.msra.mxu0 0.0
        %474 = vmatprep.subr.mxu0 0.0
        %475 = vmatpush1.msra.mxu0 0.0
        %476 = vmatprep.subr.mxu0 0.0
        %477 = vmatpush1.msra.mxu0 0.0
        %478 = vmatprep.subr.mxu0 0.0
        %479 = vmatpush1.msra.mxu0 0.0
        %480 = vmatprep.subr.mxu0 0.0
        %481 = vmatpush1.msra.mxu0 0.0
        %482 = vmatprep.subr.mxu0 0.0
        %483 = vmatpush1.msra.mxu0 0.0
        %484 = vmatprep.subr.mxu0 0.0
        %485 = vmatpush1.msra.mxu0 0.0
        %486 = vmatprep.subr.mxu0 0.0
        %487 = vmatpush1.msra.mxu0 0.0
        %488 = vmatprep.mubr.f32.mxu0 0.0
        %v489 = vand.u32 %v358, 4294901760
        %v490 = vsub.f32 %v358, %v489
        %v491 = vand.u32 %v490, 4294901760
        %v492 = vsub.f32 %v490, %v491
        %v493 = vand.u32 %v492, 4294901760
        %494 = vmatmul.mubr.f32.gmra.mrb[0].mxu0 %v493
        %v495 = vpop.f32.mrb[0].mxu0
        %v496 = vadd.f32 0.0, %v495
        %v497 = vpop.f32.mrb[0].mxu0
        %v498 = vadd.f32 0.0, %v497
        %499 = vmatprep.mubr.f32.mxu0 0.0
        %v500 = vand.u32 %v359, 4294901760
        %v501 = vsub.f32 %v359, %v500
        %v502 = vand.u32 %v501, 4294901760
        %v503 = vsub.f32 %v501, %v502
        %v504 = vand.u32 %v503, 4294901760
        %505 = vmatmul.mubr.f32.gmra.mrb[0].mxu0 %v504
        %v506 = vpop.f32.mrb[0].mxu0
        %v507 = vadd.f32 0.0, %v506
        %v508 = vpop.f32.mrb[0].mxu0
        %v509 = vadd.f32 0.0, %v508
        %510 = vdwg.mxu0
        %v511 = vand.u32 %v361, 4294901760
        %v512 = vsub.f32 %v361, %v511
        %v513 = vand.u32 %v512, 4294901760
        %v514 = vsub.f32 %v512, %v513
        %v515 = vand.u32 %v514, 4294901760
        %516 = vmatprep.subr.mxu0 %v515
        %v517 = vand.u32 %v360, 4294901760
        %v518 = vsub.f32 %v360, %v517
        %v519 = vand.u32 %v518, 4294901760
        %v520 = vsub.f32 %v518, %v519
        %v521 = vand.u32 %v520, 4294901760
        %522 = vmatpush1.msra.mxu0 %v521
        %v523 = vand.u32 %v363, 4294901760
        %v524 = vsub.f32 %v363, %v523
        %v525 = vand.u32 %v524, 4294901760
        %v526 = vsub.f32 %v524, %v525
        %v527 = vand.u32 %v526, 4294901760
        %528 = vmatprep.subr.mxu0 %v527
        %v529 = vand.u32 %v362, 4294901760
        %v530 = vsub.f32 %v362, %v529
        %v531 = vand.u32 %v530, 4294901760
        %v532 = vsub.f32 %v530, %v531
        %v533 = vand.u32 %v532, 4294901760
        %534 = vmatpush1.msra.mxu0 %v533
        %v535 = vand.u32 %v365, 4294901760
        %v536 = vsub.f32 %v365, %v535
        %v537 = vand.u32 %v536, 4294901760
        %v538 = vsub.f32 %v536, %v537
        %v539 = vand.u32 %v538, 4294901760
        %540 = vmatprep.subr.mxu0 %v539
        %v541 = vand.u32 %v364, 4294901760
        %v542 = vsub.f32 %v364, %v541
        %v543 = vand.u32 %v542, 4294901760
        %v544 = vsub.f32 %v542, %v543
        %v545 = vand.u32 %v544, 4294901760
        %546 = vmatpush1.msra.mxu0 %v545
        %v547 = vand.u32 %v367, 4294901760
        %v548 = vsub.f32 %v367, %v547
        %v549 = vand.u32 %v548, 4294901760
        %v550 = vsub.f32 %v548, %v549
        %v551 = vand.u32 %v550, 4294901760
        %552 = vmatprep.subr.mxu0 %v551
        %v553 = vand.u32 %v366, 4294901760
        %v554 = vsub.f32 %v366, %v553
        %v555 = vand.u32 %v554, 4294901760
        %v556 = vsub.f32 %v554, %v555
        %v557 = vand.u32 %v556, 4294901760
        %558 = vmatpush1.msra.mxu0 %v557
        %v559 = vand.u32 %v369, 4294901760
        %v560 = vsub.f32 %v369, %v559
        %v561 = vand.u32 %v560, 4294901760
        %v562 = vsub.f32 %v560, %v561
        %v563 = vand.u32 %v562, 4294901760
        %564 = vmatprep.subr.mxu0 %v563
        %v565 = vand.u32 %v368, 4294901760
        %v566 = vsub.f32 %v368, %v565
        %v567 = vand.u32 %v566, 4294901760
        %v568 = vsub.f32 %v566, %v567
        %v569 = vand.u32 %v568, 4294901760
        %570 = vmatpush1.msra.mxu0 %v569
        %v571 = vand.u32 %v371, 4294901760
        %v572 = vsub.f32 %v371, %v571
        %v573 = vand.u32 %v572, 4294901760
        %v574 = vsub.f32 %v572, %v573
        %v575 = vand.u32 %v574, 4294901760
        %576 = vmatprep.subr.mxu0 %v575
        %v577 = vand.u32 %v370, 4294901760
        %v578 = vsub.f32 %v370, %v577
        %v579 = vand.u32 %v578, 4294901760
        %v580 = vsub.f32 %v578, %v579
        %v581 = vand.u32 %v580, 4294901760
        %582 = vmatpush1.msra.mxu0 %v581
        %v583 = vand.u32 %v373, 4294901760
        %v584 = vsub.f32 %v373, %v583
        %v585 = vand.u32 %v584, 4294901760
        %v586 = vsub.f32 %v584, %v585
        %v587 = vand.u32 %v586, 4294901760
        %588 = vmatprep.subr.mxu0 %v587
        %v589 = vand.u32 %v372, 4294901760
        %v590 = vsub.f32 %v372, %v589
        %v591 = vand.u32 %v590, 4294901760
        %v592 = vsub.f32 %v590, %v591
        %v593 = vand.u32 %v592, 4294901760
        %594 = vmatpush1.msra.mxu0 %v593
        %v595 = vand.u32 %v375, 4294901760
        %v596 = vsub.f32 %v375, %v595
        %v597 = vand.u32 %v596, 4294901760
        %v598 = vsub.f32 %v596, %v597
        %v599 = vand.u32 %v598, 4294901760
        %600 = vmatprep.subr.mxu0 %v599
        %v601 = vand.u32 %v374, 4294901760
        %v602 = vsub.f32 %v374, %v601
        %v603 = vand.u32 %v602, 4294901760
        %v604 = vsub.f32 %v602, %v603
        %v605 = vand.u32 %v604, 4294901760
        %606 = vmatpush1.msra.mxu0 %v605
        %v607 = vand.u32 %v377, 4294901760
        %v608 = vsub.f32 %v377, %v607
        %v609 = vand.u32 %v608, 4294901760
        %v610 = vsub.f32 %v608, %v609
        %v611 = vand.u32 %v610, 4294901760
        %612 = vmatprep.subr.mxu0 %v611
        %v613 = vand.u32 %v376, 4294901760
        %v614 = vsub.f32 %v376, %v613
        %v615 = vand.u32 %v614, 4294901760
        %v616 = vsub.f32 %v614, %v615
        %v617 = vand.u32 %v616, 4294901760
        %618 = vmatpush1.msra.mxu0 %v617
        %v619 = vand.u32 %v379, 4294901760
        %v620 = vsub.f32 %v379, %v619
        %v621 = vand.u32 %v620, 4294901760
        %v622 = vsub.f32 %v620, %v621
        %v623 = vand.u32 %v622, 4294901760
        %624 = vmatprep.subr.mxu0 %v623
        %v625 = vand.u32 %v378, 4294901760
        %v626 = vsub.f32 %v378, %v625
        %v627 = vand.u32 %v626, 4294901760
        %v628 = vsub.f32 %v626, %v627
        %v629 = vand.u32 %v628, 4294901760
        %630 = vmatpush1.msra.mxu0 %v629
        %v631 = vand.u32 %v381, 4294901760
        %v632 = vsub.f32 %v381, %v631
        %v633 = vand.u32 %v632, 4294901760
        %v634 = vsub.f32 %v632, %v633
        %v635 = vand.u32 %v634, 4294901760
        %636 = vmatprep.subr.mxu0 %v635
        %v637 = vand.u32 %v380, 4294901760
        %v638 = vsub.f32 %v380, %v637
        %v639 = vand.u32 %v638, 4294901760
        %v640 = vsub.f32 %v638, %v639
        %v641 = vand.u32 %v640, 4294901760
        %642 = vmatpush1.msra.mxu0 %v641
        %v643 = vand.u32 %v383, 4294901760
        %v644 = vsub.f32 %v383, %v643
        %v645 = vand.u32 %v644, 4294901760
        %v646 = vsub.f32 %v644, %v645
        %v647 = vand.u32 %v646, 4294901760
        %648 = vmatprep.subr.mxu0 %v647
        %v649 = vand.u32 %v382, 4294901760
        %v650 = vsub.f32 %v382, %v649
        %v651 = vand.u32 %v650, 4294901760
        %v652 = vsub.f32 %v650, %v651
        %v653 = vand.u32 %v652, 4294901760
        %654 = vmatpush1.msra.mxu0 %v653
        %v655 = vand.u32 %v385, 4294901760
        %v656 = vsub.f32 %v385, %v655
        %v657 = vand.u32 %v656, 4294901760
        %v658 = vsub.f32 %v656, %v657
        %v659 = vand.u32 %v658, 4294901760
        %660 = vmatprep.subr.mxu0 %v659
        %v661 = vand.u32 %v384, 4294901760
        %v662 = vsub.f32 %v384, %v661
        %v663 = vand.u32 %v662, 4294901760
        %v664 = vsub.f32 %v662, %v663
        %v665 = vand.u32 %v664, 4294901760
        %666 = vmatpush1.msra.mxu0 %v665
        %v667 = vand.u32 %v387, 4294901760
        %v668 = vsub.f32 %v387, %v667
        %v669 = vand.u32 %v668, 4294901760
        %v670 = vsub.f32 %v668, %v669
        %v671 = vand.u32 %v670, 4294901760
        %672 = vmatprep.subr.mxu0 %v671
        %v673 = vand.u32 %v386, 4294901760
        %v674 = vsub.f32 %v386, %v673
        %v675 = vand.u32 %v674, 4294901760
        %v676 = vsub.f32 %v674, %v675
        %v677 = vand.u32 %v676, 4294901760
        %678 = vmatpush1.msra.mxu0 %v677
        %v679 = vand.u32 %v389, 4294901760
        %v680 = vsub.f32 %v389, %v679
        %v681 = vand.u32 %v680, 4294901760
        %v682 = vsub.f32 %v680, %v681
        %v683 = vand.u32 %v682, 4294901760
        %684 = vmatprep.subr.mxu0 %v683
        %v685 = vand.u32 %v388, 4294901760
        %v686 = vsub.f32 %v388, %v685
        %v687 = vand.u32 %v686, 4294901760
        %v688 = vsub.f32 %v686, %v687
        %v689 = vand.u32 %v688, 4294901760
        %690 = vmatpush1.msra.mxu0 %v689
        %v691 = vand.u32 %v391, 4294901760
        %v692 = vsub.f32 %v391, %v691
        %v693 = vand.u32 %v692, 4294901760
        %v694 = vsub.f32 %v692, %v693
        %v695 = vand.u32 %v694, 4294901760
        %696 = vmatprep.subr.mxu0 %v695
        %v697 = vand.u32 %v390, 4294901760
        %v698 = vsub.f32 %v390, %v697
        %v699 = vand.u32 %v698, 4294901760
        %v700 = vsub.f32 %v698, %v699
        %v701 = vand.u32 %v700, 4294901760
        %702 = vmatpush1.msra.mxu0 %v701
        %703 = vmatprep.subr.mxu0 0.0
        %704 = vmatpush1.msra.mxu0 0.0
        %705 = vmatprep.subr.mxu0 0.0
        %706 = vmatpush1.msra.mxu0 0.0
        %707 = vmatprep.subr.mxu0 0.0
        %708 = vmatpush1.msra.mxu0 0.0
        %709 = vmatprep.subr.mxu0 0.0
        %710 = vmatpush1.msra.mxu0 0.0
        %711 = vmatprep.subr.mxu0 0.0
        %712 = vmatpush1.msra.mxu0 0.0
        %713 = vmatprep.subr.mxu0 0.0
        %714 = vmatpush1.msra.mxu0 0.0
        %715 = vmatprep.subr.mxu0 0.0
        %716 = vmatpush1.msra.mxu0 0.0
        %717 = vmatprep.subr.mxu0 0.0
        %718 = vmatpush1.msra.mxu0 0.0
        %719 = vmatprep.subr.mxu0 0.0
        %720 = vmatpush1.msra.mxu0 0.0
        %721 = vmatprep.subr.mxu0 0.0
        %722 = vmatpush1.msra.mxu0 0.0
        %723 = vmatprep.subr.mxu0 0.0
        %724 = vmatpush1.msra.mxu0 0.0
        %725 = vmatprep.subr.mxu0 0.0
        %726 = vmatpush1.msra.mxu0 0.0
        %727 = vmatprep.subr.mxu0 0.0
        %728 = vmatpush1.msra.mxu0 0.0
        %729 = vmatprep.subr.mxu0 0.0
        %730 = vmatpush1.msra.mxu0 0.0
        %731 = vmatprep.subr.mxu0 0.0
        %732 = vmatpush1.msra.mxu0 0.0
        %733 = vmatprep.subr.mxu0 0.0
        %734 = vmatpush1.msra.mxu0 0.0
        %735 = vmatprep.mubr.f32.mxu0 0.0
        %v736 = vand.u32 %v358, 4294901760
        %737 = vmatmul.mubr.f32.gmra.mrb[0].mxu0 %v736
        %v738 = vpop.f32.mrb[0].mxu0
        %v739 = vadd.f32 %v496, %v738
        %v740 = vpop.f32.mrb[0].mxu0
        %v741 = vadd.f32 %v498, %v740
        %742 = vmatprep.mubr.f32.mxu0 0.0
        %v743 = vand.u32 %v359, 4294901760
        %744 = vmatmul.mubr.f32.gmra.mrb[0].mxu0 %v743
        %v745 = vpop.f32.mrb[0].mxu0
        %v746 = vadd.f32 %v507, %v745
        %v747 = vpop.f32.mrb[0].mxu0
        %v748 = vadd.f32 %v509, %v747
        %749 = vdwg.mxu0
        %v750 = vand.u32 %v361, 4294901760
        %v751 = vsub.f32 %v361, %v750
        %752 = vmatprep.subr.mxu0 %v751
        %v753 = vand.u32 %v360, 4294901760
        %v754 = vsub.f32 %v360, %v753
        %755 = vmatpush1.msra.mxu0 %v754
        %v756 = vand.u32 %v363, 4294901760
        %v757 = vsub.f32 %v363, %v756
        %758 = vmatprep.subr.mxu0 %v757
        %v759 = vand.u32 %v362, 4294901760
        %v760 = vsub.f32 %v362, %v759
        %761 = vmatpush1.msra.mxu0 %v760
        %v762 = vand.u32 %v365, 4294901760
        %v763 = vsub.f32 %v365, %v762
        %764 = vmatprep.subr.mxu0 %v763
        %v765 = vand.u32 %v364, 4294901760
        %v766 = vsub.f32 %v364, %v765
        %767 = vmatpush1.msra.mxu0 %v766
        %v768 = vand.u32 %v367, 4294901760
        %v769 = vsub.f32 %v367, %v768
        %770 = vmatprep.subr.mxu0 %v769
        %v771 = vand.u32 %v366, 4294901760
        %v772 = vsub.f32 %v366, %v771
        %773 = vmatpush1.msra.mxu0 %v772
        %v774 = vand.u32 %v369, 4294901760
        %v775 = vsub.f32 %v369, %v774
        %776 = vmatprep.subr.mxu0 %v775
        %v777 = vand.u32 %v368, 4294901760
        %v778 = vsub.f32 %v368, %v777
        %779 = vmatpush1.msra.mxu0 %v778
        %v780 = vand.u32 %v371, 4294901760
        %v781 = vsub.f32 %v371, %v780
        %782 = vmatprep.subr.mxu0 %v781
        %v783 = vand.u32 %v370, 4294901760
        %v784 = vsub.f32 %v370, %v783
        %785 = vmatpush1.msra.mxu0 %v784
        %v786 = vand.u32 %v373, 4294901760
        %v787 = vsub.f32 %v373, %v786
        %788 = vmatprep.subr.mxu0 %v787
        %v789 = vand.u32 %v372, 4294901760
        %v790 = vsub.f32 %v372, %v789
        %791 = vmatpush1.msra.mxu0 %v790
        %v792 = vand.u32 %v375, 4294901760
        %v793 = vsub.f32 %v375, %v792
        %794 = vmatprep.subr.mxu0 %v793
        %v795 = vand.u32 %v374, 4294901760
        %v796 = vsub.f32 %v374, %v795
        %797 = vmatpush1.msra.mxu0 %v796
        %v798 = vand.u32 %v377, 4294901760
        %v799 = vsub.f32 %v377, %v798
        %800 = vmatprep.subr.mxu0 %v799
        %v801 = vand.u32 %v376, 4294901760
        %v802 = vsub.f32 %v376, %v801
        %803 = vmatpush1.msra.mxu0 %v802
        %v804 = vand.u32 %v379, 4294901760
        %v805 = vsub.f32 %v379, %v804
        %806 = vmatprep.subr.mxu0 %v805
        %v807 = vand.u32 %v378, 4294901760
        %v808 = vsub.f32 %v378, %v807
        %809 = vmatpush1.msra.mxu0 %v808
        %v810 = vand.u32 %v381, 4294901760
        %v811 = vsub.f32 %v381, %v810
        %812 = vmatprep.subr.mxu0 %v811
        %v813 = vand.u32 %v380, 4294901760
        %v814 = vsub.f32 %v380, %v813
        %815 = vmatpush1.msra.mxu0 %v814
        %v816 = vand.u32 %v383, 4294901760
        %v817 = vsub.f32 %v383, %v816
        %818 = vmatprep.subr.mxu0 %v817
        %v819 = vand.u32 %v382, 4294901760
        %v820 = vsub.f32 %v382, %v819
        %821 = vmatpush1.msra.mxu0 %v820
        %v822 = vand.u32 %v385, 4294901760
        %v823 = vsub.f32 %v385, %v822
        %824 = vmatprep.subr.mxu0 %v823
        %v825 = vand.u32 %v384, 4294901760
        %v826 = vsub.f32 %v384, %v825
        %827 = vmatpush1.msra.mxu0 %v826
        %v828 = vand.u32 %v387, 4294901760
        %v829 = vsub.f32 %v387, %v828
        %830 = vmatprep.subr.mxu0 %v829
        %v831 = vand.u32 %v386, 4294901760
        %v832 = vsub.f32 %v386, %v831
        %833 = vmatpush1.msra.mxu0 %v832
        %v834 = vand.u32 %v389, 4294901760
        %v835 = vsub.f32 %v389, %v834
        %836 = vmatprep.subr.mxu0 %v835
        %v837 = vand.u32 %v388, 4294901760
        %v838 = vsub.f32 %v388, %v837
        %839 = vmatpush1.msra.mxu0 %v838
        %v840 = vand.u32 %v391, 4294901760
        %v841 = vsub.f32 %v391, %v840
        %842 = vmatprep.subr.mxu0 %v841
        %v843 = vand.u32 %v390, 4294901760
        %v844 = vsub.f32 %v390, %v843
        %845 = vmatpush1.msra.mxu0 %v844
        %846 = vmatprep.subr.mxu0 0.0
        %847 = vmatpush1.msra.mxu0 0.0
        %848 = vmatprep.subr.mxu0 0.0
        %849 = vmatpush1.msra.mxu0 0.0
        %850 = vmatprep.subr.mxu0 0.0
        %851 = vmatpush1.msra.mxu0 0.0
        %852 = vmatprep.subr.mxu0 0.0
        %853 = vmatpush1.msra.mxu0 0.0
        %854 = vmatprep.subr.mxu0 0.0
        %855 = vmatpush1.msra.mxu0 0.0
        %856 = vmatprep.subr.mxu0 0.0
        %857 = vmatpush1.msra.mxu0 0.0
        %858 = vmatprep.subr.mxu0 0.0
        %859 = vmatpush1.msra.mxu0 0.0
        %860 = vmatprep.subr.mxu0 0.0
        %861 = vmatpush1.msra.mxu0 0.0
        %862 = vmatprep.subr.mxu0 0.0
        %863 = vmatpush1.msra.mxu0 0.0
        %864 = vmatprep.subr.mxu0 0.0
        %865 = vmatpush1.msra.mxu0 0.0
        %866 = vmatprep.subr.mxu0 0.0
        %867 = vmatpush1.msra.mxu0 0.0
        %868 = vmatprep.subr.mxu0 0.0
        %869 = vmatpush1.msra.mxu0 0.0
        %870 = vmatprep.subr.mxu0 0.0
        %871 = vmatpush1.msra.mxu0 0.0
        %872 = vmatprep.subr.mxu0 0.0
        %873 = vmatpush1.msra.mxu0 0.0
        %874 = vmatprep.subr.mxu0 0.0
        %875 = vmatpush1.msra.mxu0 0.0
        %876 = vmatprep.subr.mxu0 0.0
        %877 = vmatpush1.msra.mxu0 0.0
        %878 = vmatprep.mubr.f32.mxu0 0.0
        %v879 = vand.u32 %v358, 4294901760
        %v880 = vsub.f32 %v358, %v879
        %881 = vmatmul.mubr.f32.gmra.mrb[0].mxu0 %v880
        %v882 = vpop.f32.mrb[0].mxu0
        %v883 = vadd.f32 %v739, %v882
        %v884 = vpop.f32.mrb[0].mxu0
        %v885 = vadd.f32 %v741, %v884
        %886 = vmatprep.mubr.f32.mxu0 0.0
        %v887 = vand.u32 %v359, 4294901760
        %v888 = vsub.f32 %v359, %v887
        %889 = vmatmul.mubr.f32.gmra.mrb[0].mxu0 %v888
        %v890 = vpop.f32.mrb[0].mxu0
        %v891 = vadd.f32 %v746, %v890
        %v892 = vpop.f32.mrb[0].mxu0
        %v893 = vadd.f32 %v748, %v892
        %894 = vdwg.mxu0
        %v895 = vand.u32 %v361, 4294901760
        %896 = vmatprep.subr.mxu0 %v895
        %v897 = vand.u32 %v360, 4294901760
        %898 = vmatpush1.msra.mxu0 %v897
        %v899 = vand.u32 %v363, 4294901760
        %900 = vmatprep.subr.mxu0 %v899
        %v901 = vand.u32 %v362, 4294901760
        %902 = vmatpush1.msra.mxu0 %v901
        %v903 = vand.u32 %v365, 4294901760
        %904 = vmatprep.subr.mxu0 %v903
        %v905 = vand.u32 %v364, 4294901760
        %906 = vmatpush1.msra.mxu0 %v905
        %v907 = vand.u32 %v367, 4294901760
        %908 = vmatprep.subr.mxu0 %v907
        %v909 = vand.u32 %v366, 4294901760
        %910 = vmatpush1.msra.mxu0 %v909
        %v911 = vand.u32 %v369, 4294901760
        %912 = vmatprep.subr.mxu0 %v911
        %v913 = vand.u32 %v368, 4294901760
        %914 = vmatpush1.msra.mxu0 %v913
        %v915 = vand.u32 %v371, 4294901760
        %916 = vmatprep.subr.mxu0 %v915
        %v917 = vand.u32 %v370, 4294901760
        %918 = vmatpush1.msra.mxu0 %v917
        %v919 = vand.u32 %v373, 4294901760
        %920 = vmatprep.subr.mxu0 %v919
        %v921 = vand.u32 %v372, 4294901760
        %922 = vmatpush1.msra.mxu0 %v921
        %v923 = vand.u32 %v375, 4294901760
        %924 = vmatprep.subr.mxu0 %v923
        %v925 = vand.u32 %v374, 4294901760
        %926 = vmatpush1.msra.mxu0 %v925
        %v927 = vand.u32 %v377, 4294901760
        %928 = vmatprep.subr.mxu0 %v927
        %v929 = vand.u32 %v376, 4294901760
        %930 = vmatpush1.msra.mxu0 %v929
        %v931 = vand.u32 %v379, 4294901760
        %932 = vmatprep.subr.mxu0 %v931
        %v933 = vand.u32 %v378, 4294901760
        %934 = vmatpush1.msra.mxu0 %v933
        %v935 = vand.u32 %v381, 4294901760
        %936 = vmatprep.subr.mxu0 %v935
        %v937 = vand.u32 %v380, 4294901760
        %938 = vmatpush1.msra.mxu0 %v937
        %v939 = vand.u32 %v383, 4294901760
        %940 = vmatprep.subr.mxu0 %v939
        %v941 = vand.u32 %v382, 4294901760
        %942 = vmatpush1.msra.mxu0 %v941
        %v943 = vand.u32 %v385, 4294901760
        %944 = vmatprep.subr.mxu0 %v943
        %v945 = vand.u32 %v384, 4294901760
        %946 = vmatpush1.msra.mxu0 %v945
        %v947 = vand.u32 %v387, 4294901760
        %948 = vmatprep.subr.mxu0 %v947
        %v949 = vand.u32 %v386, 4294901760
        %950 = vmatpush1.msra.mxu0 %v949
        %v951 = vand.u32 %v389, 4294901760
        %952 = vmatprep.subr.mxu0 %v951
        %v953 = vand.u32 %v388, 4294901760
        %954 = vmatpush1.msra.mxu0 %v953
        %v955 = vand.u32 %v391, 4294901760
        %956 = vmatprep.subr.mxu0 %v955
        %v957 = vand.u32 %v390, 4294901760
        %958 = vmatpush1.msra.mxu0 %v957
        %959 = vmatprep.subr.mxu0 0.0
        %960 = vmatpush1.msra.mxu0 0.0
        %961 = vmatprep.subr.mxu0 0.0
        %962 = vmatpush1.msra.mxu0 0.0
        %963 = vmatprep.subr.mxu0 0.0
        %964 = vmatpush1.msra.mxu0 0.0
        %965 = vmatprep.subr.mxu0 0.0
        %966 = vmatpush1.msra.mxu0 0.0
        %967 = vmatprep.subr.mxu0 0.0
        %968 = vmatpush1.msra.mxu0 0.0
        %969 = vmatprep.subr.mxu0 0.0
        %970 = vmatpush1.msra.mxu0 0.0
        %971 = vmatprep.subr.mxu0 0.0
        %972 = vmatpush1.msra.mxu0 0.0
        %973 = vmatprep.subr.mxu0 0.0
        %974 = vmatpush1.msra.mxu0 0.0
        %975 = vmatprep.subr.mxu0 0.0
        %976 = vmatpush1.msra.mxu0 0.0
        %977 = vmatprep.subr.mxu0 0.0
        %978 = vmatpush1.msra.mxu0 0.0
        %979 = vmatprep.subr.mxu0 0.0
        %980 = vmatpush1.msra.mxu0 0.0
        %981 = vmatprep.subr.mxu0 0.0
        %982 = vmatpush1.msra.mxu0 0.0
        %983 = vmatprep.subr.mxu0 0.0
        %984 = vmatpush1.msra.mxu0 0.0
        %985 = vmatprep.subr.mxu0 0.0
        %986 = vmatpush1.msra.mxu0 0.0
        %987 = vmatprep.subr.mxu0 0.0
        %988 = vmatpush1.msra.mxu0 0.0
        %989 = vmatprep.subr.mxu0 0.0
        %990 = vmatpush1.msra.mxu0 0.0
        %991 = vmatprep.mubr.f32.mxu0 0.0
        %v992 = vand.u32 %v358, 4294901760
        %v993 = vsub.f32 %v358, %v992
        %v994 = vand.u32 %v993, 4294901760
        %995 = vmatmul.mubr.f32.gmra.mrb[0].mxu0 %v994
        %v996 = vpop.f32.mrb[0].mxu0
        %v997 = vadd.f32 %v883, %v996
        %v998 = vpop.f32.mrb[0].mxu0
        %v999 = vadd.f32 %v885, %v998
        %1000 = vmatprep.mubr.f32.mxu0 0.0
        %v1001 = vand.u32 %v359, 4294901760
        %v1002 = vsub.f32 %v359, %v1001
        %v1003 = vand.u32 %v1002, 4294901760
        %1004 = vmatmul.mubr.f32.gmra.mrb[0].mxu0 %v1003
        %v1005 = vpop.f32.mrb[0].mxu0
        %v1006 = vadd.f32 %v891, %v1005
        %v1007 = vpop.f32.mrb[0].mxu0
        %v1008 = vadd.f32 %v893, %v1007
        %1009 = vdwg.mxu0
        %v1010 = vand.u32 %v361, 4294901760
        %v1011 = vsub.f32 %v361, %v1010
        %v1012 = vand.u32 %v1011, 4294901760
        %1013 = vmatprep.subr.mxu0 %v1012
        %v1014 = vand.u32 %v360, 4294901760
        %v1015 = vsub.f32 %v360, %v1014
        %v1016 = vand.u32 %v1015, 4294901760
        %1017 = vmatpush1.msra.mxu0 %v1016
        %v1018 = vand.u32 %v363, 4294901760
        %v1019 = vsub.f32 %v363, %v1018
        %v1020 = vand.u32 %v1019, 4294901760
        %1021 = vmatprep.subr.mxu0 %v1020
        %v1022 = vand.u32 %v362, 4294901760
        %v1023 = vsub.f32 %v362, %v1022
        %v1024 = vand.u32 %v1023, 4294901760
        %1025 = vmatpush1.msra.mxu0 %v1024
        %v1026 = vand.u32 %v365, 4294901760
        %v1027 = vsub.f32 %v365, %v1026
        %v1028 = vand.u32 %v1027, 4294901760
        %1029 = vmatprep.subr.mxu0 %v1028
        %v1030 = vand.u32 %v364, 4294901760
        %v1031 = vsub.f32 %v364, %v1030
        %v1032 = vand.u32 %v1031, 4294901760
        %1033 = vmatpush1.msra.mxu0 %v1032
        %v1034 = vand.u32 %v367, 4294901760
        %v1035 = vsub.f32 %v367, %v1034
        %v1036 = vand.u32 %v1035, 4294901760
        %1037 = vmatprep.subr.mxu0 %v1036
        %v1038 = vand.u32 %v366, 4294901760
        %v1039 = vsub.f32 %v366, %v1038
        %v1040 = vand.u32 %v1039, 4294901760
        %1041 = vmatpush1.msra.mxu0 %v1040
        %v1042 = vand.u32 %v369, 4294901760
        %v1043 = vsub.f32 %v369, %v1042
        %v1044 = vand.u32 %v1043, 4294901760
        %1045 = vmatprep.subr.mxu0 %v1044
        %v1046 = vand.u32 %v368, 4294901760
        %v1047 = vsub.f32 %v368, %v1046
        %v1048 = vand.u32 %v1047, 4294901760
        %1049 = vmatpush1.msra.mxu0 %v1048
        %v1050 = vand.u32 %v371, 4294901760
        %v1051 = vsub.f32 %v371, %v1050
        %v1052 = vand.u32 %v1051, 4294901760
        %1053 = vmatprep.subr.mxu0 %v1052
        %v1054 = vand.u32 %v370, 4294901760
        %v1055 = vsub.f32 %v370, %v1054
        %v1056 = vand.u32 %v1055, 4294901760
        %1057 = vmatpush1.msra.mxu0 %v1056
        %v1058 = vand.u32 %v373, 4294901760
        %v1059 = vsub.f32 %v373, %v1058
        %v1060 = vand.u32 %v1059, 4294901760
        %1061 = vmatprep.subr.mxu0 %v1060
        %v1062 = vand.u32 %v372, 4294901760
        %v1063 = vsub.f32 %v372, %v1062
        %v1064 = vand.u32 %v1063, 4294901760
        %1065 = vmatpush1.msra.mxu0 %v1064
        %v1066 = vand.u32 %v375, 4294901760
        %v1067 = vsub.f32 %v375, %v1066
        %v1068 = vand.u32 %v1067, 4294901760
        %1069 = vmatprep.subr.mxu0 %v1068
        %v1070 = vand.u32 %v374, 4294901760
        %v1071 = vsub.f32 %v374, %v1070
        %v1072 = vand.u32 %v1071, 4294901760
        %1073 = vmatpush1.msra.mxu0 %v1072
        %v1074 = vand.u32 %v377, 4294901760
        %v1075 = vsub.f32 %v377, %v1074
        %v1076 = vand.u32 %v1075, 4294901760
        %1077 = vmatprep.subr.mxu0 %v1076
        %v1078 = vand.u32 %v376, 4294901760
        %v1079 = vsub.f32 %v376, %v1078
        %v1080 = vand.u32 %v1079, 4294901760
        %1081 = vmatpush1.msra.mxu0 %v1080
        %v1082 = vand.u32 %v379, 4294901760
        %v1083 = vsub.f32 %v379, %v1082
        %v1084 = vand.u32 %v1083, 4294901760
        %1085 = vmatprep.subr.mxu0 %v1084
        %v1086 = vand.u32 %v378, 4294901760
        %v1087 = vsub.f32 %v378, %v1086
        %v1088 = vand.u32 %v1087, 4294901760
        %1089 = vmatpush1.msra.mxu0 %v1088
        %v1090 = vand.u32 %v381, 4294901760
        %v1091 = vsub.f32 %v381, %v1090
        %v1092 = vand.u32 %v1091, 4294901760
        %1093 = vmatprep.subr.mxu0 %v1092
        %v1094 = vand.u32 %v380, 4294901760
        %v1095 = vsub.f32 %v380, %v1094
        %v1096 = vand.u32 %v1095, 4294901760
        %1097 = vmatpush1.msra.mxu0 %v1096
        %v1098 = vand.u32 %v383, 4294901760
        %v1099 = vsub.f32 %v383, %v1098
        %v1100 = vand.u32 %v1099, 4294901760
        %1101 = vmatprep.subr.mxu0 %v1100
        %v1102 = vand.u32 %v382, 4294901760
        %v1103 = vsub.f32 %v382, %v1102
        %v1104 = vand.u32 %v1103, 4294901760
        %1105 = vmatpush1.msra.mxu0 %v1104
        %v1106 = vand.u32 %v385, 4294901760
        %v1107 = vsub.f32 %v385, %v1106
        %v1108 = vand.u32 %v1107, 4294901760
        %1109 = vmatprep.subr.mxu0 %v1108
        %v1110 = vand.u32 %v384, 4294901760
        %v1111 = vsub.f32 %v384, %v1110
        %v1112 = vand.u32 %v1111, 4294901760
        %1113 = vmatpush1.msra.mxu0 %v1112
        %v1114 = vand.u32 %v387, 4294901760
        %v1115 = vsub.f32 %v387, %v1114
        %v1116 = vand.u32 %v1115, 4294901760
        %1117 = vmatprep.subr.mxu0 %v1116
        %v1118 = vand.u32 %v386, 4294901760
        %v1119 = vsub.f32 %v386, %v1118
        %v1120 = vand.u32 %v1119, 4294901760
        %1121 = vmatpush1.msra.mxu0 %v1120
        %v1122 = vand.u32 %v389, 4294901760
        %v1123 = vsub.f32 %v389, %v1122
        %v1124 = vand.u32 %v1123, 4294901760
        %1125 = vmatprep.subr.mxu0 %v1124
        %v1126 = vand.u32 %v388, 4294901760
        %v1127 = vsub.f32 %v388, %v1126
        %v1128 = vand.u32 %v1127, 4294901760
        %1129 = vmatpush1.msra.mxu0 %v1128
        %v1130 = vand.u32 %v391, 4294901760
        %v1131 = vsub.f32 %v391, %v1130
        %v1132 = vand.u32 %v1131, 4294901760
        %1133 = vmatprep.subr.mxu0 %v1132
        %v1134 = vand.u32 %v390, 4294901760
        %v1135 = vsub.f32 %v390, %v1134
        %v1136 = vand.u32 %v1135, 4294901760
        %1137 = vmatpush1.msra.mxu0 %v1136
        %1138 = vmatprep.subr.mxu0 0.0
        %1139 = vmatpush1.msra.mxu0 0.0
        %1140 = vmatprep.subr.mxu0 0.0
        %1141 = vmatpush1.msra.mxu0 0.0
        %1142 = vmatprep.subr.mxu0 0.0
        %1143 = vmatpush1.msra.mxu0 0.0
        %1144 = vmatprep.subr.mxu0 0.0
        %1145 = vmatpush1.msra.mxu0 0.0
        %1146 = vmatprep.subr.mxu0 0.0
        %1147 = vmatpush1.msra.mxu0 0.0
        %1148 = vmatprep.subr.mxu0 0.0
        %1149 = vmatpush1.msra.mxu0 0.0
        %1150 = vmatprep.subr.mxu0 0.0
        %1151 = vmatpush1.msra.mxu0 0.0
        %1152 = vmatprep.subr.mxu0 0.0
        %1153 = vmatpush1.msra.mxu0 0.0
        %1154 = vmatprep.subr.mxu0 0.0
        %1155 = vmatpush1.msra.mxu0 0.0
        %1156 = vmatprep.subr.mxu0 0.0
        %1157 = vmatpush1.msra.mxu0 0.0
        %1158 = vmatprep.subr.mxu0 0.0
        %1159 = vmatpush1.msra.mxu0 0.0
        %1160 = vmatprep.subr.mxu0 0.0
        %1161 = vmatpush1.msra.mxu0 0.0
        %1162 = vmatprep.subr.mxu0 0.0
        %1163 = vmatpush1.msra.mxu0 0.0
        %1164 = vmatprep.subr.mxu0 0.0
        %1165 = vmatpush1.msra.mxu0 0.0
        %1166 = vmatprep.subr.mxu0 0.0
        %1167 = vmatpush1.msra.mxu0 0.0
        %1168 = vmatprep.subr.mxu0 0.0
        %1169 = vmatpush1.msra.mxu0 0.0
        %1170 = vmatprep.mubr.f32.mxu0 0.0
        %v1171 = vand.u32 %v358, 4294901760
        %1172 = vmatmul.mubr.f32.gmra.mrb[0].mxu0 %v1171
        %v1173 = vpop.f32.mrb[0].mxu0
        %v1174 = vadd.f32 %v997, %v1173
        %v1175 = vpop.f32.mrb[0].mxu0
        %v1176 = vadd.f32 %v999, %v1175
        %1177 = vmatprep.mubr.f32.mxu0 0.0
        %v1178 = vand.u32 %v359, 4294901760
        %1179 = vmatmul.mubr.f32.gmra.mrb[0].mxu0 %v1178
        %v1180 = vpop.f32.mrb[0].mxu0
        %v1181 = vadd.f32 %v1006, %v1180
        %v1182 = vpop.f32.mrb[0].mxu0
        %v1183 = vadd.f32 %v1008, %v1182
        %1184 = vdwg.mxu0
        %v1185 = vand.u32 %v361, 4294901760
        %1186 = vmatprep.subr.mxu0 %v1185
        %v1187 = vand.u32 %v360, 4294901760
        %1188 = vmatpush1.msra.mxu0 %v1187
        %v1189 = vand.u32 %v363, 4294901760
        %1190 = vmatprep.subr.mxu0 %v1189
        %v1191 = vand.u32 %v362, 4294901760
        %1192 = vmatpush1.msra.mxu0 %v1191
        %v1193 = vand.u32 %v365, 4294901760
        %1194 = vmatprep.subr.mxu0 %v1193
        %v1195 = vand.u32 %v364, 4294901760
        %1196 = vmatpush1.msra.mxu0 %v1195
        %v1197 = vand.u32 %v367, 4294901760
        %1198 = vmatprep.subr.mxu0 %v1197
        %v1199 = vand.u32 %v366, 4294901760
        %1200 = vmatpush1.msra.mxu0 %v1199
        %v1201 = vand.u32 %v369, 4294901760
        %1202 = vmatprep.subr.mxu0 %v1201
        %v1203 = vand.u32 %v368, 4294901760
        %1204 = vmatpush1.msra.mxu0 %v1203
        %v1205 = vand.u32 %v371, 4294901760
        %1206 = vmatprep.subr.mxu0 %v1205
        %v1207 = vand.u32 %v370, 4294901760
        %1208 = vmatpush1.msra.mxu0 %v1207
        %v1209 = vand.u32 %v373, 4294901760
        %1210 = vmatprep.subr.mxu0 %v1209
        %v1211 = vand.u32 %v372, 4294901760
        %1212 = vmatpush1.msra.mxu0 %v1211
        %v1213 = vand.u32 %v375, 4294901760
        %1214 = vmatprep.subr.mxu0 %v1213
        %v1215 = vand.u32 %v374, 4294901760
        %1216 = vmatpush1.msra.mxu0 %v1215
        %v1217 = vand.u32 %v377, 4294901760
        %1218 = vmatprep.subr.mxu0 %v1217
        %v1219 = vand.u32 %v376, 4294901760
        %1220 = vmatpush1.msra.mxu0 %v1219
        %v1221 = vand.u32 %v379, 4294901760
        %1222 = vmatprep.subr.mxu0 %v1221
        %v1223 = vand.u32 %v378, 4294901760
        %1224 = vmatpush1.msra.mxu0 %v1223
        %v1225 = vand.u32 %v381, 4294901760
        %1226 = vmatprep.subr.mxu0 %v1225
        %v1227 = vand.u32 %v380, 4294901760
        %1228 = vmatpush1.msra.mxu0 %v1227
        %v1229 = vand.u32 %v383, 4294901760
        %1230 = vmatprep.subr.mxu0 %v1229
        %v1231 = vand.u32 %v382, 4294901760
        %1232 = vmatpush1.msra.mxu0 %v1231
        %v1233 = vand.u32 %v385, 4294901760
        %1234 = vmatprep.subr.mxu0 %v1233
        %v1235 = vand.u32 %v384, 4294901760
        %1236 = vmatpush1.msra.mxu0 %v1235
        %v1237 = vand.u32 %v387, 4294901760
        %1238 = vmatprep.subr.mxu0 %v1237
        %v1239 = vand.u32 %v386, 4294901760
        %1240 = vmatpush1.msra.mxu0 %v1239
        %v1241 = vand.u32 %v389, 4294901760
        %1242 = vmatprep.subr.mxu0 %v1241
        %v1243 = vand.u32 %v388, 4294901760
        %1244 = vmatpush1.msra.mxu0 %v1243
        %v1245 = vand.u32 %v391, 4294901760
        %1246 = vmatprep.subr.mxu0 %v1245
        %v1247 = vand.u32 %v390, 4294901760
        %1248 = vmatpush1.msra.mxu0 %v1247
        %1249 = vmatprep.subr.mxu0 0.0
        %1250 = vmatpush1.msra.mxu0 0.0
        %1251 = vmatprep.subr.mxu0 0.0
        %1252 = vmatpush1.msra.mxu0 0.0
        %1253 = vmatprep.subr.mxu0 0.0
        %1254 = vmatpush1.msra.mxu0 0.0
        %1255 = vmatprep.subr.mxu0 0.0
        %1256 = vmatpush1.msra.mxu0 0.0
        %1257 = vmatprep.subr.mxu0 0.0
        %1258 = vmatpush1.msra.mxu0 0.0
        %1259 = vmatprep.subr.mxu0 0.0
        %1260 = vmatpush1.msra.mxu0 0.0
        %1261 = vmatprep.subr.mxu0 0.0
        %1262 = vmatpush1.msra.mxu0 0.0
        %1263 = vmatprep.subr.mxu0 0.0
        %1264 = vmatpush1.msra.mxu0 0.0
        %1265 = vmatprep.subr.mxu0 0.0
        %1266 = vmatpush1.msra.mxu0 0.0
        %1267 = vmatprep.subr.mxu0 0.0
        %1268 = vmatpush1.msra.mxu0 0.0
        %1269 = vmatprep.subr.mxu0 0.0
        %1270 = vmatpush1.msra.mxu0 0.0
        %1271 = vmatprep.subr.mxu0 0.0
        %1272 = vmatpush1.msra.mxu0 0.0
        %1273 = vmatprep.subr.mxu0 0.0
        %1274 = vmatpush1.msra.mxu0 0.0
        %1275 = vmatprep.subr.mxu0 0.0
        %1276 = vmatpush1.msra.mxu0 0.0
        %1277 = vmatprep.subr.mxu0 0.0
        %1278 = vmatpush1.msra.mxu0 0.0
        %1279 = vmatprep.subr.mxu0 0.0
        %1280 = vmatpush1.msra.mxu0 0.0
        %1281 = vmatprep.mubr.f32.mxu0 0.0
        %v1282 = vand.u32 %v358, 4294901760
        %1283 = vmatmul.mubr.f32.gmra.mrb[0].mxu0 %v1282
        %v1284 = vpop.f32.mrb[0].mxu0
        %v1285 = vadd.f32 %v1174, %v1284
        %v1286 = vpop.f32.mrb[0].mxu0
        %v1287 = vadd.f32 %v1176, %v1286
        %1288 = vmatprep.mubr.f32.mxu0 0.0
        %v1289 = vand.u32 %v359, 4294901760
        %1290 = vmatmul.mubr.f32.gmra.mrb[0].mxu0 %v1289
        %v1291 = vpop.f32.mrb[0].mxu0
        %v1292 = vadd.f32 %v1181, %v1291
        %v1293 = vpop.f32.mrb[0].mxu0
        %v1294 = vadd.f32 %v1183, %v1293
        %1295 = vdwg.mxu0
        %v1296 = vmul.f32 %v1287, 0.5
        %v1297 = vmul.f32 %v1294, 0.5
        %v1298 = vmul.f32 %v1296, 1.442695
        %v1299 = vpow.pop %v1298
        %v1300 = vmul.f32 %v1297, 1.442695
        %v1301 = vpow.pop %v1300
        %1302 = vst [vmem:[%s297] sm:$0xff] %v1285
        %1303 = vst [vmem:[%s297 + $0x8] sm:$0xff] %v1292
        %1304 = vst [vmem:[%s304] sm:$0xff] %v1287
        %1305 = vst [vmem:[%s304 + $0x8] sm:$0xff] %v1294
        %1306 = vst [vmem:[%s311] sm:$0xff] %v1299
        %1307 = vst [vmem:[%s311 + $0x8] sm:$0xff] %v1301
        %v1308 = vld [vmem:[%s337 + $0x8] sm:$0x1]
        %v1309 = vld [vmem:[%s337 + $0x18] sm:$0x1]
        %v1310 = vld [vmem:[%s337 + $0x28] sm:$0x1]
        %v1311 = vld [vmem:[%s337 + $0x38] sm:$0x1]
        %v1312 = vld [vmem:[%s337 + $0x48] sm:$0x1]
        %v1313 = vld [vmem:[%s337 + $0x58] sm:$0x1]
        %v1314 = vld [vmem:[%s337 + $0x68] sm:$0x1]
        %v1315 = vld [vmem:[%s337 + $0x78] sm:$0x1]
        %v1316 = vld [vmem:[%s337 + $0x88] sm:$0x1]
        %v1317 = vld [vmem:[%s337 + $0x98] sm:$0x1]
        %v1318 = vld [vmem:[%s337 + $0xa8] sm:$0x1]
        %v1319 = vld [vmem:[%s337 + $0xb8] sm:$0x1]
        %v1320 = vld [vmem:[%s337 + $0xc8] sm:$0x1]
        %v1321 = vld [vmem:[%s337 + $0xd8] sm:$0x1]
        %v1322 = vld [vmem:[%s337 + $0xe8] sm:$0x1]
        %v1323 = vld [vmem:[%s337 + $0xf8] sm:$0x1]
        %v1326 = vrot.slane %v1299, 1
        %v1327 = vrot.slane %v1299, 2
        %v1328 = vrot.slane %v1299, 3
        %v1329 = vrot.slane %v1299, 4
        %v1330 = vrot.slane %v1299, 5
        %v1331 = vrot.slane %v1299, 6
        %v1332 = vrot.slane %v1299, 7
        %v1333 = vrot.slane %v1301, 1
        %v1334 = vrot.slane %v1301, 2
        %v1335 = vrot.slane %v1301, 3
        %v1336 = vrot.slane %v1301, 4
        %v1337 = vrot.slane %v1301, 5
        %v1338 = vrot.slane %v1301, 6
        %v1339 = vrot.slane %v1301, 7
        %v1356 = vmul.f32 %v1308, %v1299
        %v1357 = vmul.f32 %v1309, %v1326
        %v1358 = vmul.f32 %v1310, %v1327
        %v1359 = vmul.f32 %v1311, %v1328
        %v1360 = vmul.f32 %v1312, %v1329
        %v1361 = vmul.f32 %v1313, %v1330
        %v1362 = vmul.f32 %v1314, %v1331
        %v1363 = vmul.f32 %v1315, %v1332
        %v1364 = vmul.f32 %v1316, %v1301
        %v1365 = vmul.f32 %v1317, %v1333
        %v1366 = vmul.f32 %v1318, %v1334
        %v1367 = vmul.f32 %v1319, %v1335
        %v1368 = vmul.f32 %v1320, %v1336
        %v1369 = vmul.f32 %v1321, %v1337
        %v1370 = vmul.f32 %v1322, %v1338
        %v1371 = vmul.f32 %v1323, %v1339
        %v1388 = vrot.slane %v1357, 7
        %vm1389 = vcmask 1041409
        %v1390 = vsel %vm1389, %v1388, %v1356
        %v1391 = vrot.slane %v1358, 6
        %vm1392 = vcmask 1042434
        %v1393 = vsel %vm1392, %v1391, %v1390
        %v1394 = vrot.slane %v1359, 5
        %vm1395 = vcmask 1043459
        %v1396 = vsel %vm1395, %v1394, %v1393
        %v1397 = vrot.slane %v1360, 4
        %vm1398 = vcmask 1044484
        %v1399 = vsel %vm1398, %v1397, %v1396
        %v1400 = vrot.slane %v1361, 3
        %vm1401 = vcmask 1045509
        %v1402 = vsel %vm1401, %v1400, %v1399
        %v1403 = vrot.slane %v1362, 2
        %vm1404 = vcmask 1046534
        %v1405 = vsel %vm1404, %v1403, %v1402
        %v1406 = vrot.slane %v1363, 1
        %vm1407 = vcmask 1047559
        %v1408 = vsel %vm1407, %v1406, %v1405
        %v1409 = vrot.slane %v1365, 7
        %v1410 = vsel %vm1389, %v1409, %v1364
        %v1411 = vrot.slane %v1366, 6
        %v1412 = vsel %vm1392, %v1411, %v1410
        %v1413 = vrot.slane %v1367, 5
        %v1414 = vsel %vm1395, %v1413, %v1412
        %v1415 = vrot.slane %v1368, 4
        %v1416 = vsel %vm1398, %v1415, %v1414
        %v1417 = vrot.slane %v1369, 3
        %v1418 = vsel %vm1401, %v1417, %v1416
        %v1419 = vrot.slane %v1370, 2
        %v1420 = vsel %vm1404, %v1419, %v1418
        %v1421 = vrot.slane %v1371, 1
        %v1422 = vsel %vm1407, %v1421, %v1420
        %v1425 = vadd.f32 %v1285, %v1408
        %v1426 = vadd.f32 %v1292, %v1422
        %1427 = vst [vmem:[%s318] sm:$0xff] %v1425
        %1428 = vst [vmem:[%s318 + $0x8] sm:$0xff] %v1426
        %v1431 = vcombine.high %v1285, %v1285
        %v1433 = vunpack.c.l.s4 1966171168
        %v1434 = vunpack.c.0.s8 %v1433
        %v1435 = vlaneseq
        %v1436 = vshrl.u32 %v1435, 7
        %v1437 = vsub.s32 %v1434, %v1436
        %v1438 = vrot.slane %v1285, %v1437
        %v1440 = vunpack.c.l.s4 1966171168
        %v1441 = vunpack.c.0.s8 %v1440
        %v1442 = vlaneseq
        %v1443 = vshrl.u32 %v1442, 7
        %v1444 = vsub.s32 %v1441, %v1443
        %v1445 = vrot.slane %v1431, %v1444
        %v1446 = vcombine.high %v1438, %v1438
        %v1447 = vcombine.high %v1445, %v1445
        %v1449 = vunpack.c.l.s4 1966171168
        %v1450 = vunpack.c.0.s8 %v1449
        %v1451 = vlaneseq
        %v1452 = vshrl.u32 %v1451, 7
        %v1453 = vsub.s32 %v1450, %v1452
        %v1454 = vrot.slane %v1438, %v1453
        %v1456 = vunpack.c.l.s4 1966171168
        %v1457 = vunpack.c.0.s8 %v1456
        %v1458 = vlaneseq
        %v1459 = vshrl.u32 %v1458, 7
        %v1460 = vsub.s32 %v1457, %v1459
        %v1461 = vrot.slane %v1445, %v1460
        %v1463 = vunpack.c.l.s4 1966171168
        %v1464 = vunpack.c.0.s8 %v1463
        %v1465 = vlaneseq
        %v1466 = vshrl.u32 %v1465, 7
        %v1467 = vsub.s32 %v1464, %v1466
        %v1468 = vrot.slane %v1446, %v1467
        %v1470 = vunpack.c.l.s4 1966171168
        %v1471 = vunpack.c.0.s8 %v1470
        %v1472 = vlaneseq
        %v1473 = vshrl.u32 %v1472, 7
        %v1474 = vsub.s32 %v1471, %v1473
        %v1475 = vrot.slane %v1447, %v1474
        %v1476 = vcombine.high %v1454, %v1454
        %v1477 = vcombine.high %v1461, %v1461
        %v1478 = vcombine.high %v1468, %v1468
        %v1479 = vcombine.high %v1475, %v1475
        %v1480 = vcombine.high %v1292, %v1292
        %v1482 = vunpack.c.l.s4 1966171168
        %v1483 = vunpack.c.0.s8 %v1482
        %v1484 = vlaneseq
        %v1485 = vshrl.u32 %v1484, 7
        %v1486 = vsub.s32 %v1483, %v1485
        %v1487 = vrot.slane %v1292, %v1486
        %v1489 = vunpack.c.l.s4 1966171168
        %v1490 = vunpack.c.0.s8 %v1489
        %v1491 = vlaneseq
        %v1492 = vshrl.u32 %v1491, 7
        %v1493 = vsub.s32 %v1490, %v1492
        %v1494 = vrot.slane %v1480, %v1493
        %v1495 = vcombine.high %v1487, %v1487
        %v1496 = vcombine.high %v1494, %v1494
        %v1498 = vunpack.c.l.s4 1966171168
        %v1499 = vunpack.c.0.s8 %v1498
        %v1500 = vlaneseq
        %v1501 = vshrl.u32 %v1500, 7
        %v1502 = vsub.s32 %v1499, %v1501
        %v1503 = vrot.slane %v1487, %v1502
        %v1505 = vunpack.c.l.s4 1966171168
        %v1506 = vunpack.c.0.s8 %v1505
        %v1507 = vlaneseq
        %v1508 = vshrl.u32 %v1507, 7
        %v1509 = vsub.s32 %v1506, %v1508
        %v1510 = vrot.slane %v1494, %v1509
        %v1512 = vunpack.c.l.s4 1966171168
        %v1513 = vunpack.c.0.s8 %v1512
        %v1514 = vlaneseq
        %v1515 = vshrl.u32 %v1514, 7
        %v1516 = vsub.s32 %v1513, %v1515
        %v1517 = vrot.slane %v1495, %v1516
        %v1519 = vunpack.c.l.s4 1966171168
        %v1520 = vunpack.c.0.s8 %v1519
        %v1521 = vlaneseq
        %v1522 = vshrl.u32 %v1521, 7
        %v1523 = vsub.s32 %v1520, %v1522
        %v1524 = vrot.slane %v1496, %v1523
        %v1525 = vcombine.high %v1503, %v1503
        %v1526 = vcombine.high %v1510, %v1510
        %v1527 = vcombine.high %v1517, %v1517
        %v1528 = vcombine.high %v1524, %v1524
        %v1529 = vld [vmem:[%s337] sm:$0xff]
        %v1530 = vld [vmem:[%s337 + $0x10] sm:$0xff]
        %v1531 = vld [vmem:[%s337 + $0x20] sm:$0xff]
        %v1532 = vld [vmem:[%s337 + $0x30] sm:$0xff]
        %v1533 = vld [vmem:[%s337 + $0x40] sm:$0xff]
        %v1534 = vld [vmem:[%s337 + $0x50] sm:$0xff]
        %v1535 = vld [vmem:[%s337 + $0x60] sm:$0xff]
        %v1536 = vld [vmem:[%s337 + $0x70] sm:$0xff]
        %v1537 = vld [vmem:[%s337 + $0x80] sm:$0xff]
        %v1538 = vld [vmem:[%s337 + $0x90] sm:$0xff]
        %v1539 = vld [vmem:[%s337 + $0xa0] sm:$0xff]
        %v1540 = vld [vmem:[%s337 + $0xb0] sm:$0xff]
        %v1541 = vld [vmem:[%s337 + $0xc0] sm:$0xff]
        %v1542 = vld [vmem:[%s337 + $0xd0] sm:$0xff]
        %v1543 = vld [vmem:[%s337 + $0xe0] sm:$0xff]
        %v1544 = vld [vmem:[%s337 + $0xf0] sm:$0xff]
        %v1545 = vcombine.high %v1299, %v1299
        %v1547 = vunpack.c.l.s4 1966171168
        %v1548 = vunpack.c.0.s8 %v1547
        %v1549 = vlaneseq
        %v1550 = vshrl.u32 %v1549, 7
        %v1551 = vsub.s32 %v1548, %v1550
        %v1552 = vrot.slane %v1299, %v1551
        %v1554 = vunpack.c.l.s4 1966171168
        %v1555 = vunpack.c.0.s8 %v1554
        %v1556 = vlaneseq
        %v1557 = vshrl.u32 %v1556, 7
        %v1558 = vsub.s32 %v1555, %v1557
        %v1559 = vrot.slane %v1545, %v1558
        %v1560 = vcombine.high %v1552, %v1552
        %v1561 = vcombine.high %v1559, %v1559
        %v1563 = vunpack.c.l.s4 1966171168
        %v1564 = vunpack.c.0.s8 %v1563
        %v1565 = vlaneseq
        %v1566 = vshrl.u32 %v1565, 7
        %v1567 = vsub.s32 %v1564, %v1566
        %v1568 = vrot.slane %v1552, %v1567
        %v1570 = vunpack.c.l.s4 1966171168
        %v1571 = vunpack.c.0.s8 %v1570
        %v1572 = vlaneseq
        %v1573 = vshrl.u32 %v1572, 7
        %v1574 = vsub.s32 %v1571, %v1573
        %v1575 = vrot.slane %v1559, %v1574
        %v1577 = vunpack.c.l.s4 1966171168
        %v1578 = vunpack.c.0.s8 %v1577
        %v1579 = vlaneseq
        %v1580 = vshrl.u32 %v1579, 7
        %v1581 = vsub.s32 %v1578, %v1580
        %v1582 = vrot.slane %v1560, %v1581
        %v1584 = vunpack.c.l.s4 1966171168
        %v1585 = vunpack.c.0.s8 %v1584
        %v1586 = vlaneseq
        %v1587 = vshrl.u32 %v1586, 7
        %v1588 = vsub.s32 %v1585, %v1587
        %v1589 = vrot.slane %v1561, %v1588
        %v1590 = vcombine.high %v1568, %v1568
        %v1591 = vcombine.high %v1575, %v1575
        %v1592 = vcombine.high %v1582, %v1582
        %v1593 = vcombine.high %v1589, %v1589
        %v1594 = vcombine.high %v1301, %v1301
        %v1596 = vunpack.c.l.s4 1966171168
        %v1597 = vunpack.c.0.s8 %v1596
        %v1598 = vlaneseq
        %v1599 = vshrl.u32 %v1598, 7
        %v1600 = vsub.s32 %v1597, %v1599
        %v1601 = vrot.slane %v1301, %v1600
        %v1603 = vunpack.c.l.s4 1966171168
        %v1604 = vunpack.c.0.s8 %v1603
        %v1605 = vlaneseq
        %v1606 = vshrl.u32 %v1605, 7
        %v1607 = vsub.s32 %v1604, %v1606
        %v1608 = vrot.slane %v1594, %v1607
        %v1609 = vcombine.high %v1601, %v1601
        %v1610 = vcombine.high %v1608, %v1608
        %v1612 = vunpack.c.l.s4 1966171168
        %v1613 = vunpack.c.0.s8 %v1612
        %v1614 = vlaneseq
        %v1615 = vshrl.u32 %v1614, 7
        %v1616 = vsub.s32 %v1613, %v1615
        %v1617 = vrot.slane %v1601, %v1616
        %v1619 = vunpack.c.l.s4 1966171168
        %v1620 = vunpack.c.0.s8 %v1619
        %v1621 = vlaneseq
        %v1622 = vshrl.u32 %v1621, 7
        %v1623 = vsub.s32 %v1620, %v1622
        %v1624 = vrot.slane %v1608, %v1623
        %v1626 = vunpack.c.l.s4 1966171168
        %v1627 = vunpack.c.0.s8 %v1626
        %v1628 = vlaneseq
        %v1629 = vshrl.u32 %v1628, 7
        %v1630 = vsub.s32 %v1627, %v1629
        %v1631 = vrot.slane %v1609, %v1630
        %v1633 = vunpack.c.l.s4 1966171168
        %v1634 = vunpack.c.0.s8 %v1633
        %v1635 = vlaneseq
        %v1636 = vshrl.u32 %v1635, 7
        %v1637 = vsub.s32 %v1634, %v1636
        %v1638 = vrot.slane %v1610, %v1637
        %v1639 = vcombine.high %v1617, %v1617
        %v1640 = vcombine.high %v1624, %v1624
        %v1641 = vcombine.high %v1631, %v1631
        %v1642 = vcombine.high %v1638, %v1638
        %v1643 = vlaneseq
        %v1644 = vshrl.u32 %v1643, 7
        %v1645 = vsub.s32 0, %v1644
        %v1646 = vrot.slane %v1568, %v1645
        %v1647 = vlaneseq
        %v1648 = vshrl.u32 %v1647, 7
        %v1649 = vsub.s32 0, %v1648
        %v1650 = vrot.slane %v1582, %v1649
        %v1651 = vlaneseq
        %v1652 = vshrl.u32 %v1651, 7
        %v1653 = vsub.s32 0, %v1652
        %v1654 = vrot.slane %v1590, %v1653
        %v1655 = vlaneseq
        %v1656 = vshrl.u32 %v1655, 7
        %v1657 = vsub.s32 0, %v1656
        %v1658 = vrot.slane %v1592, %v1657
        %v1659 = vlaneseq
        %v1660 = vshrl.u32 %v1659, 7
        %v1661 = vsub.s32 0, %v1660
        %v1662 = vrot.slane %v1575, %v1661
        %v1663 = vlaneseq
        %v1664 = vshrl.u32 %v1663, 7
        %v1665 = vsub.s32 0, %v1664
        %v1666 = vrot.slane %v1589, %v1665
        %v1667 = vlaneseq
        %v1668 = vshrl.u32 %v1667, 7
        %v1669 = vsub.s32 0, %v1668
        %v1670 = vrot.slane %v1591, %v1669
        %v1671 = vlaneseq
        %v1672 = vshrl.u32 %v1671, 7
        %v1673 = vsub.s32 0, %v1672
        %v1674 = vrot.slane %v1593, %v1673
        %v1675 = vlaneseq
        %v1676 = vshrl.u32 %v1675, 7
        %v1677 = vsub.s32 0, %v1676
        %v1678 = vrot.slane %v1617, %v1677
        %v1679 = vlaneseq
        %v1680 = vshrl.u32 %v1679, 7
        %v1681 = vsub.s32 0, %v1680
        %v1682 = vrot.slane %v1631, %v1681
        %v1683 = vlaneseq
        %v1684 = vshrl.u32 %v1683, 7
        %v1685 = vsub.s32 0, %v1684
        %v1686 = vrot.slane %v1639, %v1685
        %v1687 = vlaneseq
        %v1688 = vshrl.u32 %v1687, 7
        %v1689 = vsub.s32 0, %v1688
        %v1690 = vrot.slane %v1641, %v1689
        %v1691 = vlaneseq
        %v1692 = vshrl.u32 %v1691, 7
        %v1693 = vsub.s32 0, %v1692
        %v1694 = vrot.slane %v1624, %v1693
        %v1695 = vlaneseq
        %v1696 = vshrl.u32 %v1695, 7
        %v1697 = vsub.s32 0, %v1696
        %v1698 = vrot.slane %v1638, %v1697
        %v1699 = vlaneseq
        %v1700 = vshrl.u32 %v1699, 7
        %v1701 = vsub.s32 0, %v1700
        %v1702 = vrot.slane %v1640, %v1701
        %v1703 = vlaneseq
        %v1704 = vshrl.u32 %v1703, 7
        %v1705 = vsub.s32 0, %v1704
        %v1706 = vrot.slane %v1642, %v1705
        %v1723 = vmul.f32 %v1529, %v1646
        %v1724 = vmul.f32 %v1530, %v1650
        %v1725 = vmul.f32 %v1531, %v1654
        %v1726 = vmul.f32 %v1532, %v1658
        %v1727 = vmul.f32 %v1533, %v1662
        %v1728 = vmul.f32 %v1534, %v1666
        %v1729 = vmul.f32 %v1535, %v1670
        %v1730 = vmul.f32 %v1536, %v1674
        %v1731 = vmul.f32 %v1537, %v1678
        %v1732 = vmul.f32 %v1538, %v1682
        %v1733 = vmul.f32 %v1539, %v1686
        %v1734 = vmul.f32 %v1540, %v1690
        %v1735 = vmul.f32 %v1541, %v1694
        %v1736 = vmul.f32 %v1542, %v1698
        %v1737 = vmul.f32 %v1543, %v1702
        %v1738 = vmul.f32 %v1544, %v1706
        %v1739 = vlaneseq
        %v1740 = vshrl.u32 %v1739, 7
        %v1741 = vsub.s32 0, %v1740
        %v1742 = vrot.slane %v1454, %v1741
        %v1743 = vlaneseq
        %v1744 = vshrl.u32 %v1743, 7
        %v1745 = vsub.s32 0, %v1744
        %v1746 = vrot.slane %v1468, %v1745
        %v1747 = vlaneseq
        %v1748 = vshrl.u32 %v1747, 7
        %v1749 = vsub.s32 0, %v1748
        %v1750 = vrot.slane %v1476, %v1749
        %v1751 = vlaneseq
        %v1752 = vshrl.u32 %v1751, 7
        %v1753 = vsub.s32 0, %v1752
        %v1754 = vrot.slane %v1478, %v1753
        %v1755 = vlaneseq
        %v1756 = vshrl.u32 %v1755, 7
        %v1757 = vsub.s32 0, %v1756
        %v1758 = vrot.slane %v1461, %v1757
        %v1759 = vlaneseq
        %v1760 = vshrl.u32 %v1759, 7
        %v1761 = vsub.s32 0, %v1760
        %v1762 = vrot.slane %v1475, %v1761
        %v1763 = vlaneseq
        %v1764 = vshrl.u32 %v1763, 7
        %v1765 = vsub.s32 0, %v1764
        %v1766 = vrot.slane %v1477, %v1765
        %v1767 = vlaneseq
        %v1768 = vshrl.u32 %v1767, 7
        %v1769 = vsub.s32 0, %v1768
        %v1770 = vrot.slane %v1479, %v1769
        %v1771 = vlaneseq
        %v1772 = vshrl.u32 %v1771, 7
        %v1773 = vsub.s32 0, %v1772
        %v1774 = vrot.slane %v1503, %v1773
        %v1775 = vlaneseq
        %v1776 = vshrl.u32 %v1775, 7
        %v1777 = vsub.s32 0, %v1776
        %v1778 = vrot.slane %v1517, %v1777
        %v1779 = vlaneseq
        %v1780 = vshrl.u32 %v1779, 7
        %v1781 = vsub.s32 0, %v1780
        %v1782 = vrot.slane %v1525, %v1781
        %v1783 = vlaneseq
        %v1784 = vshrl.u32 %v1783, 7
        %v1785 = vsub.s32 0, %v1784
        %v1786 = vrot.slane %v1527, %v1785
        %v1787 = vlaneseq
        %v1788 = vshrl.u32 %v1787, 7
        %v1789 = vsub.s32 0, %v1788
        %v1790 = vrot.slane %v1510, %v1789
        %v1791 = vlaneseq
        %v1792 = vshrl.u32 %v1791, 7
        %v1793 = vsub.s32 0, %v1792
        %v1794 = vrot.slane %v1524, %v1793
        %v1795 = vlaneseq
        %v1796 = vshrl.u32 %v1795, 7
        %v1797 = vsub.s32 0, %v1796
        %v1798 = vrot.slane %v1526, %v1797
        %v1799 = vlaneseq
        %v1800 = vshrl.u32 %v1799, 7
        %v1801 = vsub.s32 0, %v1800
        %v1802 = vrot.slane %v1528, %v1801
        %v1819 = vadd.f32 %v1742, %v1723
        %v1820 = vadd.f32 %v1746, %v1724
        %v1821 = vadd.f32 %v1750, %v1725
        %v1822 = vadd.f32 %v1754, %v1726
        %v1823 = vadd.f32 %v1758, %v1727
        %v1824 = vadd.f32 %v1762, %v1728
        %v1825 = vadd.f32 %v1766, %v1729
        %v1826 = vadd.f32 %v1770, %v1730
        %v1827 = vadd.f32 %v1774, %v1731
        %v1828 = vadd.f32 %v1778, %v1732
        %v1829 = vadd.f32 %v1782, %v1733
        %v1830 = vadd.f32 %v1786, %v1734
        %v1831 = vadd.f32 %v1790, %v1735
        %v1832 = vadd.f32 %v1794, %v1736
        %v1833 = vadd.f32 %v1798, %v1737
        %v1834 = vadd.f32 %v1802, %v1738
        %1835 = vst [vmem:[%s325] sm:$0xff] %v1819
        %1836 = vst [vmem:[%s325 + $0x8] sm:$0xff] %v1820
        %1837 = vst [vmem:[%s325 + $0x10] sm:$0xff] %v1821
        %1838 = vst [vmem:[%s325 + $0x18] sm:$0xff] %v1822
        %1839 = vst [vmem:[%s325 + $0x20] sm:$0xff] %v1823
        %1840 = vst [vmem:[%s325 + $0x28] sm:$0xff] %v1824
        %1841 = vst [vmem:[%s325 + $0x30] sm:$0xff] %v1825
        %1842 = vst [vmem:[%s325 + $0x38] sm:$0xff] %v1826
        %1843 = vst [vmem:[%s325 + $0x40] sm:$0xff] %v1827
        %1844 = vst [vmem:[%s325 + $0x48] sm:$0xff] %v1828
        %1845 = vst [vmem:[%s325 + $0x50] sm:$0xff] %v1829
        %1846 = vst [vmem:[%s325 + $0x58] sm:$0xff] %v1830
        %1847 = vst [vmem:[%s325 + $0x60] sm:$0xff] %v1831
        %1848 = vst [vmem:[%s325 + $0x68] sm:$0xff] %v1832
        %1849 = vst [vmem:[%s325 + $0x70] sm:$0xff] %v1833
        %1850 = vst [vmem:[%s325 + $0x78] sm:$0xff] %v1834
        %s1851 = sand.u32 %s109, 1
        %s1852 = scalar_lea.sflag [#allocation3], %s1851
        %s1853 = sand.u32 %s109, 1
        %s1854 = smul.addr %s1853, 16
        %s1855 = scalar_lea.vmem [#allocation2], %s1854
        %s1856 = sand.u32 %s28, 1
        %s1857 = scalar_lea.sflag [#allocation5], %s1856
        %s1858 = sand.u32 %s135, 1
        %s1859 = smul.addr %s1858, 16
        %s1860 = scalar_lea.vmem [#allocation4], %s1859
        %s1861 = sand.u32 %s28, 1
        %s1862 = scalar_lea.sflag [#allocation5], %s1861
        %s1863 = sand.u32 %s161, 1
        %s1864 = smul.addr %s1863, 16
        %s1865 = scalar_lea.vmem [#allocation6], %s1864
        %s1866 = sand.u32 %s28, 1
        %s1867 = scalar_lea.sflag [#allocation8], %s1866
        %s1868 = sand.u32 %s187, 1
        %s1869 = smul.addr %s1868, 16
        %s1870 = scalar_lea.vmem [#allocation7], %s1869
        %s1871 = sand.u32 %s28, 1
        %s1872 = scalar_lea.sflag [#allocation8], %s1871
        %s1873 = sand.u32 %s213, 1
        %s1874 = smul.addr %s1873, 128
        %s1875 = scalar_lea.vmem [#allocation9], %s1874
        // Predicated region
        $region33: #{tpu_custom_call.1} parent=31 // pred_check
          %p1876 = pneg %p119
        $region34: #{tpu_custom_call.1} parent=31 // pred_check_branch
          %1878 = sbr.rel (%p1876) target = $region36
        $region35: #{tpu_custom_call.1} parent=31 // pred_region
          %s1879 = smul.u32 2, %s28
          %s1881 = ssub.s32 256, 256
          %1882 = vsyncadd %s1852, %s1881
          %s1883 = smul.addr %s1879, 128
          %s1884 = scalar_lea.hbm %s3, %s1883
          %s1885 = sshll.u32 %s1855, 4
          %s1886 = int_to_ptr.vmem [resolvable:$true] %s1885
          %1891 = dma.vmem_to_hbm [thread:$0]  %s1886, 256, %s1884, %s1852, 128, 128, 8
        $region36: #{tpu_custom_call.1} parent=31 // pred_fallthru
          _
        // Predicated region
        $region37: #{tpu_custom_call.1} parent=31 // pred_check
          %p1892 = pneg %p145
        $region38: #{tpu_custom_call.1} parent=31 // pred_check_branch
          %1894 = sbr.rel (%p1892) target = $region40
        $region39: #{tpu_custom_call.1} parent=31 // pred_region
          %s1895 = smul.u32 2, %s28
          %s1897 = ssub.s32 256, 256
          %1898 = vsyncadd %s1857, %s1897
          %s1899 = smul.addr %s1895, 128
          %s1900 = scalar_lea.hbm %s4, %s1899
          %s1901 = sshll.u32 %s1860, 4
          %s1902 = int_to_ptr.vmem [resolvable:$true] %s1901
          %1907 = dma.vmem_to_hbm [thread:$0]  %s1902, 256, %s1900, %s1857, 128, 128, 8
        $region40: #{tpu_custom_call.1} parent=31 // pred_fallthru
          _
        // Predicated region
        $region41: #{tpu_custom_call.1} parent=31 // pred_check
          %p1908 = pneg %p171
        $region42: #{tpu_custom_call.1} parent=31 // pred_check_branch
          %1910 = sbr.rel (%p1908) target = $region44
        $region43: #{tpu_custom_call.1} parent=31 // pred_region
          %s1911 = smul.u32 2, %s28
          %s1913 = ssub.s32 256, 256
          %1914 = vsyncadd %s1862, %s1913
          %s1915 = smul.addr %s1911, 128
          %s1916 = scalar_lea.hbm %s5, %s1915
          %s1917 = sshll.u32 %s1865, 4
          %s1918 = int_to_ptr.vmem [resolvable:$true] %s1917
          %1923 = dma.vmem_to_hbm [thread:$0]  %s1918, 256, %s1916, %s1862, 128, 128, 8
        $region44: #{tpu_custom_call.1} parent=31 // pred_fallthru
          _
        // Predicated region
        $region45: #{tpu_custom_call.1} parent=31 // pred_check
          %p1924 = pneg %p197
        $region46: #{tpu_custom_call.1} parent=31 // pred_check_branch
          %1926 = sbr.rel (%p1924) target = $region48
        $region47: #{tpu_custom_call.1} parent=31 // pred_region
          %s1927 = smul.u32 2, %s28
          %s1929 = ssub.s32 256, 256
          %1930 = vsyncadd %s1867, %s1929
          %s1931 = smul.addr %s1927, 128
          %s1932 = scalar_lea.hbm %s6, %s1931
          %s1933 = sshll.u32 %s1870, 4
          %s1934 = int_to_ptr.vmem [resolvable:$true] %s1933
          %1939 = dma.vmem_to_hbm [thread:$0]  %s1934, 256, %s1932, %s1867, 128, 128, 8
        $region48: #{tpu_custom_call.1} parent=31 // pred_fallthru
          _
        // Predicated region
        $region49: #{tpu_custom_call.1} parent=31 // pred_check
          %p1940 = pneg %p223
        $region50: #{tpu_custom_call.1} parent=31 // pred_check_branch
          %1942 = sbr.rel (%p1940) target = $region52
        $region51: #{tpu_custom_call.1} parent=31 // pred_region
          %s1943 = smul.u32 16, %s28
          %s1945 = ssub.s32 2048, 2048
          %1946 = vsyncadd %s1872, %s1945
          %s1947 = smul.addr %s1943, 128
          %s1948 = scalar_lea.hbm %s7, %s1947
          %s1949 = sshll.u32 %s1875, 4
          %s1950 = int_to_ptr.vmem [resolvable:$true] %s1949
          %1955 = dma.vmem_to_hbm [thread:$0]  %s1950, 2048, %s1948, %s1872, 128, 128, 8
        $region52: #{tpu_custom_call.1} parent=31 // pred_fallthru
          _
      $region32: #{tpu_custom_call.1} parent=5 // pred_fallthru
        _
      %p1956 = scmp.le.s32.totalorder 2, %s23
      // Predicated region
      $region53: #{tpu_custom_call.1} parent=5 // pred_check
        %p1957 = pneg %p1956
      $region54: #{tpu_custom_call.1} parent=5 // pred_check_branch
        %1959 = sbr.rel (%p1957) target = $region56
      $region55: #{tpu_custom_call.1} parent=5 // pred_region
        %s1960 = ssub.s32 %s23, 2
        // Predicated region
        $region57: #{tpu_custom_call.1} parent=55 // pred_check
          %p1961 = pneg %p125
        $region58: #{tpu_custom_call.1} parent=55 // pred_check_branch
          %1963 = sbr.rel (%p1961) target = $region60
        $region59: #{tpu_custom_call.1} parent=55 // pred_region
          %s1964 = sand.u32 %s110, 1
          %s1965 = scalar_lea.sflag [#allocation3], %s1964
          %s1966 = sand.u32 %s110, 1
          %s1967 = smul.addr %s1966, 16
          %s1968 = scalar_lea.vmem [#allocation2], %s1967
          %1969 = dma.done %s1965, 256
        $region60: #{tpu_custom_call.1} parent=55 // pred_fallthru
          _
        // Predicated region
        $region61: #{tpu_custom_call.1} parent=55 // pred_check
          %p1970 = pneg %p151
        $region62: #{tpu_custom_call.1} parent=55 // pred_check_branch
          %1972 = sbr.rel (%p1970) target = $region64
        $region63: #{tpu_custom_call.1} parent=55 // pred_region
          %s1973 = sand.u32 %s29, 1
          %s1974 = scalar_lea.sflag [#allocation5], %s1973
          %s1975 = sand.u32 %s136, 1
          %s1976 = smul.addr %s1975, 16
          %s1977 = scalar_lea.vmem [#allocation4], %s1976
          %1978 = dma.done %s1974, 256
        $region64: #{tpu_custom_call.1} parent=55 // pred_fallthru
          _
        // Predicated region
        $region65: #{tpu_custom_call.1} parent=55 // pred_check
          %p1979 = pneg %p177
        $region66: #{tpu_custom_call.1} parent=55 // pred_check_branch
          %1981 = sbr.rel (%p1979) target = $region68
        $region67: #{tpu_custom_call.1} parent=55 // pred_region
          %s1982 = sand.u32 %s29, 1
          %s1983 = scalar_lea.sflag [#allocation5], %s1982
          %s1984 = sand.u32 %s162, 1
          %s1985 = smul.addr %s1984, 16
          %s1986 = scalar_lea.vmem [#allocation6], %s1985
          %1987 = dma.done %s1983, 256
        $region68: #{tpu_custom_call.1} parent=55 // pred_fallthru
          _
        // Predicated region
        $region69: #{tpu_custom_call.1} parent=55 // pred_check
          %p1988 = pneg %p203
        $region70: #{tpu_custom_call.1} parent=55 // pred_check_branch
          %1990 = sbr.rel (%p1988) target = $region72
        $region71: #{tpu_custom_call.1} parent=55 // pred_region
          %s1991 = sand.u32 %s29, 1
          %s1992 = scalar_lea.sflag [#allocation8], %s1991
          %s1993 = sand.u32 %s188, 1
          %s1994 = smul.addr %s1993, 16
          %s1995 = scalar_lea.vmem [#allocation7], %s1994
          %1996 = dma.done %s1992, 256
        $region72: #{tpu_custom_call.1} parent=55 // pred_fallthru
          _
        // Predicated region
        $region73: #{tpu_custom_call.1} parent=55 // pred_check
          %p1997 = pneg %p229
        $region74: #{tpu_custom_call.1} parent=55 // pred_check_branch
          %1999 = sbr.rel (%p1997) target = $region76
        $region75: #{tpu_custom_call.1} parent=55 // pred_region
          %s2000 = sand.u32 %s29, 1
          %s2001 = scalar_lea.sflag [#allocation8], %s2000
          %s2002 = sand.u32 %s214, 1
          %s2003 = smul.addr %s2002, 128
          %s2004 = scalar_lea.vmem [#allocation9], %s2003
          %2005 = dma.done %s2001, 2048
        $region76: #{tpu_custom_call.1} parent=55 // pred_fallthru
          _
      $region56: #{tpu_custom_call.1} parent=5 // pred_fallthru
        _
    $region6: #{tpu_custom_call.1} parent=1 // loop_footer
      %s27 = sadd.s32 1, %s23
    $region7: #{tpu_custom_call.1} parent=1 // loop_footer_branch
      %22 = sbr.rel target = $region3
    $region8: #{tpu_custom_call.1} parent=1 // loop_exit
      _
    %2006 = vsyncpa [#allocation3], 1
    %s2007 = scalar_lea.sflag [#allocation3], 1
    %2008 = vsyncpa %s2007, 1
    %2009 = vsyncpa [#allocation5], 1
    %s2010 = scalar_lea.sflag [#allocation5], 1
    %2011 = vsyncpa %s2010, 1
    %2012 = vsyncpa [#allocation8], 1
    %s2013 = scalar_lea.sflag [#allocation8], 1
    %2014 = vsyncpa %s2013, 1

</llo_original>
